<compile_context>
chip_gen: v5e
topology: v5e:2x2
jax: 0.10.0
libtpu: 0.0.40
codegen_flags: <defaults>
</compile_context>

<pallas_src>
import functools

import jax
import jax.numpy as jnp
from jax import lax
from jax.experimental import pallas as pl
from jax.experimental.pallas import tpu as pltpu


# ----------------------------------------------------------------------------
# Kernel: single invocation; the whole recurrence is an unrolled in-kernel loop
# ----------------------------------------------------------------------------
def decoder_kernel(w0_t_ref,        # (H, 4H)  step-0 W_hh^T, gates packed on lanes (i,f,g,o)
                   w_eff_t_ref,     # (H, 4H)  folded W_eff^T for steps t >= 1
                   b0_ref,          # (1, 4H)  step-0 bias (b_ih + b_hh)
                   b_eff_ref,       # (1, 4H)  folded bias for steps t >= 1
                   w_out_row_ref,   # (1, H)   Linear(H,1) weight as a row
                   h0_ref,          # (Bp, H)
                   c0_ref,          # (Bp, H)
                   b_out_ref,       # SMEM (1,)   Linear bias
                   sum_tgt_ref,     # SMEM (S,)   per-step sum_j  tgt[j, t]
                   sumsq_tgt_ref,   # SMEM (S,)   per-step sum_j  tgt[j, t]^2
                   loss_ref,        # (1, 1)  output
                   *, batch):
    Bp, H = h0_ref.shape
    S = sum_tgt_ref.shape[0]

    # Loop-invariant operands, hoisted once.
    w0_t = w0_t_ref[...]
    w_eff_t = w_eff_t_ref[...]
    b0 = b0_ref[...]
    b_eff = b_eff_ref[...]
    w_out_row = w_out_row_ref[...]
    b_out = b_out_ref[0]

    bf = jnp.float32(batch)
    inv_b2 = jnp.float32(1.0 / (batch * batch))

    # Valid-row mask for the padded batch (padded rows never enter the loss).
    row_ids = lax.broadcasted_iota(jnp.int32, (Bp, 1), 0)
    row_mask = (row_ids < batch).astype(jnp.float32)          # (Bp, 1)

    def cell(h, c, w_t, b):
        # One fused lane-dense matmul: (Bp,H) x (H,4H) -> (Bp,4H) pre-activation.
        pre = jnp.dot(h, w_t, preferred_element_type=jnp.float32) + b
        sig = jax.nn.sigmoid(pre)                              # one EUP pass covers i,f,o
        i_g = sig[:, 0:H]
        f_g = sig[:, H:2 * H]
        o_g = sig[:, 3 * H:4 * H]
        g_g = jnp.tanh(pre[:, 2 * H:3 * H])
        c_new = f_g * c + i_g * g_g
        h_new = o_g * jnp.tanh(c_new)
        return h_new, c_new

    def loss_term(h_new, t):
        # pred is only needed for the loss now (feedback is folded into W_eff).
        pred = jnp.sum(h_new * w_out_row, axis=-1, keepdims=True) + b_out   # (Bp,1)
        pm = pred * row_mask
        s1 = jnp.sum(pm, keepdims=True)                        # (1,1) sum of valid preds
        s2 = jnp.sum(pm * pm, keepdims=True)                   # (1,1) sum of valid preds^2
        t1 = sum_tgt_ref[t]
        t2 = sumsq_tgt_ref[t]
        # nn.MSELoss((B,1) vs (B,)) broadcast-mean over B*B, exact identity:
        return (bf * s2 - 2.0 * s1 * t1 + bf * t2) * inv_b2    # (1,1)

    # Step 0 peeled: x0 = 0.0 -> plain recurrent weight / bias.
    h1, c1 = cell(h0_ref[...], c0_ref[...], w0_t, b0)
    loss = loss_term(h1, 0)

    # Steps 1..S-1: Linear feedback folded into W_eff (rank-1 update).
    def step(t, carry):
        h, c, acc = carry
        h_new, c_new = cell(h, c, w_eff_t, b_eff)
        acc = acc + loss_term(h_new, t)
        return h_new, c_new, acc

    unroll = True if S <= 9 else 4   # cap unroll for longer sequences (vreg pressure)
    _, _, loss = lax.fori_loop(1, S, step, (h1, c1, loss), unroll=unroll)
    loss_ref[...] = loss


# ----------------------------------------------------------------------------
# Wrapper (parameter plumbing / padding is glue; compute is in the kernel)
# ----------------------------------------------------------------------------
def decoder_forward_pallas(outputs, h0, c0, params):
    """outputs: (B, S) targets.  h0/c0: (num_layers=1, B, H)."""
    w_ih, w_hh, b_ih, b_hh, w_out, b_out = params
    B, S = outputs.shape
    H = h0.shape[-1]
    H4 = 4 * H
    Bp = ((B + 7) // 8) * 8                      # pad batch to a full sublane tile
    f32 = jnp.float32

    outputs_f = outputs.astype(f32)

    # Lane-dense gate packing (PyTorch gate order i, f, g, o along the lanes).
    w_hh_t = jnp.transpose(w_hh.astype(f32))                     # (H, 4H)
    w_ih_row = w_ih.astype(f32).reshape(1, H4)                   # (1, 4H)  (input_size == 1)
    b_all = (b_ih + b_hh).astype(f32).reshape(1, H4)             # (1, 4H)
    w_out_row = w_out.astype(f32).reshape(1, H)                  # (1, H)
    w_out_col = w_out.astype(f32).reshape(H, 1)                  # (H, 1)
    b_out_s = b_out.astype(f32).reshape(1)                       # (1,)  -> SMEM

    # Rank-1 fold of the Linear(H,1) feedback into the recurrence (steps t>=1):
    #   x_t = h_{t-1} @ w_out^T + b_out   =>
    #   gates_t = h_{t-1} @ (W_hh^T + w_out^T @ w_ih_row) + (b + b_out*w_ih_row)
    w_eff_t = w_hh_t + w_out_col @ w_ih_row                      # (H, 4H)
    b_eff = b_all + b_out.astype(f32).reshape(1, 1) * w_ih_row   # (1, 4H)

    h0_p = jnp.zeros((Bp, H), f32).at[:B].set(h0.reshape(B, H).astype(f32))
    c0_p = jnp.zeros((Bp, H), f32).at[:B].set(c0.reshape(B, H).astype(f32))

    # Per-step target sums for the algebraic broadcast-MSE (tiny; live in SMEM).
    sum_tgt = jnp.sum(outputs_f, axis=0)                         # (S,)
    sumsq_tgt = jnp.sum(outputs_f * outputs_f, axis=0)           # (S,)

    kernel = functools.partial(decoder_kernel, batch=B)

    loss = pl.pallas_call(
        kernel,
        out_shape=jax.ShapeDtypeStruct((1, 1), f32),
        in_specs=[
            pl.BlockSpec(memory_space=pltpu.MemorySpace.VMEM),   # w0_t
            pl.BlockSpec(memory_space=pltpu.MemorySpace.VMEM),   # w_eff_t
            pl.BlockSpec(memory_space=pltpu.MemorySpace.VMEM),   # b0
            pl.BlockSpec(memory_space=pltpu.MemorySpace.VMEM),   # b_eff
            pl.BlockSpec(memory_space=pltpu.MemorySpace.VMEM),   # w_out_row
            pl.BlockSpec(memory_space=pltpu.MemorySpace.VMEM),   # h0
            pl.BlockSpec(memory_space=pltpu.MemorySpace.VMEM),   # c0
            pl.BlockSpec(memory_space=pltpu.MemorySpace.SMEM),   # b_out
            pl.BlockSpec(memory_space=pltpu.MemorySpace.SMEM),   # sum_tgt
            pl.BlockSpec(memory_space=pltpu.MemorySpace.SMEM),   # sumsq_tgt
        ],
        out_specs=pl.BlockSpec(memory_space=pltpu.MemorySpace.VMEM),
    )(w_hh_t, w_eff_t, b_all, b_eff, w_out_row, h0_p, c0_p,
      b_out_s, sum_tgt, sumsq_tgt)
    return loss[0, 0]


# ----------------------------------------------------------------------------
# Pure-JAX reference (mirrors the PyTorch forward) for correctness checking
# ----------------------------------------------------------------------------
def decoder_forward_ref(outputs, h0, c0, params):
    w_ih, w_hh, b_ih, b_hh, w_out, b_out = params
    B, S = outputs.shape
    H = h0.shape[-1]
    h = h0.reshape(B, H)
    c = c0.reshape(B, H)
    x = jnp.zeros((B, 1), jnp.float32)
    loss = jnp.float32(0.0)
    for i in range(S):
        gates = x @ w_ih.T + h @ w_hh.T + b_ih + b_hh
        i_g = jax.nn.sigmoid(gates[:, 0:H])
        f_g = jax.nn.sigmoid(gates[:, H:2 * H])
        g_g = jnp.tanh(gates[:, 2 * H:3 * H])
        o_g = jax.nn.sigmoid(gates[:, 3 * H:4 * H])
        c = f_g * c + i_g * g_g
        h = o_g * jnp.tanh(c)
        pred = h @ w_out.T + b_out                       # (B, 1)
        diff = pred - outputs[:, i][None, :]             # (B, B) broadcast (MSELoss warns but computes)
        loss = loss + jnp.mean(diff * diff)
        x = pred
    return loss


if __name__ == "__main__":
    B, S, H = 4, 8, 32   # batch, num_steps, hidden_dim

    key = jax.random.PRNGKey(0)
    ks = jax.random.split(key, 9)
    bound = 1.0 / jnp.sqrt(jnp.float32(H))   # PyTorch default init range

    w_ih = jax.random.uniform(ks[0], (4 * H, 1), jnp.float32, -bound, bound)
    w_hh = jax.random.uniform(ks[1], (4 * H, H), jnp.float32, -bound, bound)
    b_ih = jax.random.uniform(ks[2], (4 * H,), jnp.float32, -bound, bound)
    b_hh = jax.random.uniform(ks[3], (4 * H,), jnp.float32, -bound, bound)
    w_out = jax.random.uniform(ks[4], (1, H), jnp.float32, -bound, bound)
    b_out = jax.random.uniform(ks[5], (1,), jnp.float32, -bound, bound)
    params = (w_ih, w_hh, b_ih, b_hh, w_out, b_out)

    outputs = jax.random.normal(ks[6], (B, S), jnp.float32)      # targets
    h0 = jax.random.normal(ks[7], (1, B, H), jnp.float32)        # (layers, B, H)
    c0 = jax.random.normal(ks[8], (1, B, H), jnp.float32)

    loss_pallas = jax.block_until_ready(
        decoder_forward_pallas(outputs, h0, c0, params))
    loss_ref = jax.block_until_ready(
        decoder_forward_ref(outputs, h0, c0, params))

    assert jnp.isfinite(loss_pallas)
    assert jnp.allclose(loss_pallas, loss_ref, rtol=2e-2, atol=2e-3), (
        loss_pallas, loss_ref)
    print("KERNEL_OK")
</pallas_src>

<mosaic_0001>
module attributes {stable_mosaic.version = 11 : i64} {
  func.func @decoder_kernel(%arg0: memref<32x128xf32, #tpu.memory_space<vmem>>, %arg1: memref<32x128xf32, #tpu.memory_space<vmem>>, %arg2: memref<1x128xf32, #tpu.memory_space<vmem>>, %arg3: memref<1x128xf32, #tpu.memory_space<vmem>>, %arg4: memref<1x32xf32, #tpu.memory_space<vmem>>, %arg5: memref<8x32xf32, #tpu.memory_space<vmem>>, %arg6: memref<8x32xf32, #tpu.memory_space<vmem>>, %arg7: memref<1xf32, #tpu.memory_space<smem>>, %arg8: memref<8xf32, #tpu.memory_space<smem>>, %arg9: memref<8xf32, #tpu.memory_space<smem>>, %arg10: memref<1x1xf32, #tpu.memory_space<vmem>>) attributes {dimension_semantics = [], scalar_prefetch = 0 : i64, scratch_operands = 0 : i64, tpu.core_type = #tpu.core_type<tc>} {
    %c0 = arith.constant 0 : index
    %c0_0 = arith.constant 0 : index
    %0 = vector.load %arg0[%c0, %c0_0] : memref<32x128xf32, #tpu.memory_space<vmem>>, vector<32x128xf32>
    %c0_1 = arith.constant 0 : index
    %c0_2 = arith.constant 0 : index
    %1 = vector.load %arg1[%c0_1, %c0_2] : memref<32x128xf32, #tpu.memory_space<vmem>>, vector<32x128xf32>
    %c0_3 = arith.constant 0 : index
    %c0_4 = arith.constant 0 : index
    %2 = vector.load %arg2[%c0_3, %c0_4] : memref<1x128xf32, #tpu.memory_space<vmem>>, vector<1x128xf32>
    %c0_5 = arith.constant 0 : index
    %c0_6 = arith.constant 0 : index
    %3 = vector.load %arg3[%c0_5, %c0_6] : memref<1x128xf32, #tpu.memory_space<vmem>>, vector<1x128xf32>
    %c0_7 = arith.constant 0 : index
    %c0_8 = arith.constant 0 : index
    %4 = vector.load %arg4[%c0_7, %c0_8] : memref<1x32xf32, #tpu.memory_space<vmem>>, vector<1x32xf32>
    %c0_9 = arith.constant 0 : index
    %5 = memref.load %arg7[%c0_9] : memref<1xf32, #tpu.memory_space<smem>>
    %6 = tpu.iota {dimensions = array<i32: 0>} : vector<8x1xi32>
    %c4_i32 = arith.constant 4 : i32
    %7 = vector.broadcast %c4_i32 : i32 to vector<8x1xi32>
    %8 = arith.cmpi slt, %6, %7 : vector<8x1xi32>
    %9 = arith.extui %8 : vector<8x1xi1> to vector<8x1xi32>
    %10 = arith.sitofp %9 : vector<8x1xi32> to vector<8x1xf32>
    %c0_10 = arith.constant 0 : index
    %c0_11 = arith.constant 0 : index
    %11 = vector.load %arg5[%c0_10, %c0_11] : memref<8x32xf32, #tpu.memory_space<vmem>>, vector<8x32xf32>
    %c0_12 = arith.constant 0 : index
    %c0_13 = arith.constant 0 : index
    %12 = vector.load %arg6[%c0_12, %c0_13] : memref<8x32xf32, #tpu.memory_space<vmem>>, vector<8x32xf32>
    %cst = arith.constant dense<0.000000e+00> : vector<8x128xf32>
    %13 = tpu.matmul %11, %0, %cst {dimension_numbers = #tpu.dot_dimension_numbers<[1], [0], [0], [1], [0, 0, 1, 1], [], []>} : vector<8x32xf32>, vector<32x128xf32>, vector<8x128xf32> -> vector<8x128xf32>
    %14 = vector.broadcast %2 : vector<1x128xf32> to vector<8x128xf32>
    %15 = arith.addf %13, %14 : vector<8x128xf32>
    %16 = arith.negf %15 : vector<8x128xf32>
    %17 = math.exp %16 : vector<8x128xf32>
    %cst_14 = arith.constant 1.000000e+00 : f32
    %18 = vector.broadcast %cst_14 : f32 to vector<8x128xf32>
    %19 = arith.addf %18, %17 : vector<8x128xf32>
    %20 = arith.divf %18, %19 : vector<8x128xf32>
    %21 = vector.extract_strided_slice %20 {offsets = [0, 0], sizes = [8, 32], strides = [1, 1]} : vector<8x128xf32> to vector<8x32xf32>
    %22 = vector.extract_strided_slice %20 {offsets = [0, 32], sizes = [8, 32], strides = [1, 1]} : vector<8x128xf32> to vector<8x32xf32>
    %23 = vector.extract_strided_slice %20 {offsets = [0, 96], sizes = [8, 32], strides = [1, 1]} : vector<8x128xf32> to vector<8x32xf32>
    %24 = vector.extract_strided_slice %15 {offsets = [0, 64], sizes = [8, 32], strides = [1, 1]} : vector<8x128xf32> to vector<8x32xf32>
    %25 = math.tanh %24 : vector<8x32xf32>
    %26 = arith.mulf %22, %12 : vector<8x32xf32>
    %27 = arith.mulf %21, %25 : vector<8x32xf32>
    %28 = arith.addf %26, %27 : vector<8x32xf32>
    %29 = math.tanh %28 : vector<8x32xf32>
    %30 = arith.mulf %23, %29 : vector<8x32xf32>
    %31 = vector.broadcast %4 : vector<1x32xf32> to vector<8x32xf32>
    %32 = arith.mulf %30, %31 : vector<8x32xf32>
    %cst_15 = arith.constant dense<0.000000e+00> : vector<8xf32>
    %33 = vector.multi_reduction <add>, %32, %cst_15 [1] : vector<8x32xf32> to vector<8xf32>
    %34 = vector.shape_cast %33 : vector<8xf32> to vector<8x1xf32>
    %35 = vector.broadcast %5 : f32 to vector<8x1xf32>
    %36 = arith.addf %34, %35 : vector<8x1xf32>
    %37 = arith.mulf %36, %10 : vector<8x1xf32>
    %38 = vector.shape_cast %37 : vector<8x1xf32> to vector<1x8x1xf32>
    %cst_16 = arith.constant dense<0.000000e+00> : vector<1xf32>
    %39 = vector.multi_reduction <add>, %38, %cst_16 [1, 2] : vector<1x8x1xf32> to vector<1xf32>
    %40 = vector.shape_cast %39 : vector<1xf32> to vector<1x1x1xf32>
    %41 = vector.extract %40[0, 0, 0] : f32 from vector<1x1x1xf32>
    %42 = vector.broadcast %41 : f32 to vector<1x1xf32>
    %43 = arith.mulf %37, %37 : vector<8x1xf32>
    %44 = vector.shape_cast %43 : vector<8x1xf32> to vector<1x8x1xf32>
    %cst_17 = arith.constant dense<0.000000e+00> : vector<1xf32>
    %45 = vector.multi_reduction <add>, %44, %cst_17 [1, 2] : vector<1x8x1xf32> to vector<1xf32>
    %46 = vector.shape_cast %45 : vector<1xf32> to vector<1x1x1xf32>
    %47 = vector.extract %46[0, 0, 0] : f32 from vector<1x1x1xf32>
    %48 = vector.broadcast %47 : f32 to vector<1x1xf32>
    %c0_18 = arith.constant 0 : index
    %49 = memref.load %arg8[%c0_18] : memref<8xf32, #tpu.memory_space<smem>>
    %c0_19 = arith.constant 0 : index
    %50 = memref.load %arg9[%c0_19] : memref<8xf32, #tpu.memory_space<smem>>
    %cst_20 = arith.constant 4.000000e+00 : f32
    %51 = vector.broadcast %cst_20 : f32 to vector<1x1xf32>
    %52 = arith.mulf %51, %48 : vector<1x1xf32>
    %cst_21 = arith.constant 2.000000e+00 : f32
    %53 = vector.broadcast %cst_21 : f32 to vector<1x1xf32>
    %54 = arith.mulf %53, %42 : vector<1x1xf32>
    %55 = vector.broadcast %49 : f32 to vector<1x1xf32>
    %56 = arith.mulf %54, %55 : vector<1x1xf32>
    %57 = arith.subf %52, %56 : vector<1x1xf32>
    %cst_22 = arith.constant 4.000000e+00 : f32
    %58 = arith.mulf %cst_22, %50 : f32
    %59 = vector.broadcast %58 : f32 to vector<1x1xf32>
    %60 = arith.addf %57, %59 : vector<1x1xf32>
    %cst_23 = arith.constant 6.250000e-02 : f32
    %61 = vector.broadcast %cst_23 : f32 to vector<1x1xf32>
    %62 = arith.mulf %60, %61 : vector<1x1xf32>
    %cst_24 = arith.constant 4.000000e+00 : f32
    %cst_25 = arith.constant 6.250000e-02 : f32
    %c1_i32 = arith.constant 1 : i32
    %cst_26 = arith.constant dense<0.000000e+00> : vector<8x128xf32>
    %63 = tpu.matmul %30, %1, %cst_26 {dimension_numbers = #tpu.dot_dimension_numbers<[1], [0], [0], [1], [0, 0, 1, 1], [], []>} : vector<8x32xf32>, vector<32x128xf32>, vector<8x128xf32> -> vector<8x128xf32>
    %64 = vector.broadcast %3 : vector<1x128xf32> to vector<8x128xf32>
    %65 = arith.addf %63, %64 : vector<8x128xf32>
    %66 = arith.negf %65 : vector<8x128xf32>
    %67 = math.exp %66 : vector<8x128xf32>
    %cst_27 = arith.constant 1.000000e+00 : f32
    %68 = vector.broadcast %cst_27 : f32 to vector<8x128xf32>
    %69 = arith.addf %68, %67 : vector<8x128xf32>
    %70 = arith.divf %68, %69 : vector<8x128xf32>
    %71 = vector.extract_strided_slice %70 {offsets = [0, 0], sizes = [8, 32], strides = [1, 1]} : vector<8x128xf32> to vector<8x32xf32>
    %72 = vector.extract_strided_slice %70 {offsets = [0, 32], sizes = [8, 32], strides = [1, 1]} : vector<8x128xf32> to vector<8x32xf32>
    %73 = vector.extract_strided_slice %70 {offsets = [0, 96], sizes = [8, 32], strides = [1, 1]} : vector<8x128xf32> to vector<8x32xf32>
    %74 = vector.extract_strided_slice %65 {offsets = [0, 64], sizes = [8, 32], strides = [1, 1]} : vector<8x128xf32> to vector<8x32xf32>
    %75 = math.tanh %74 : vector<8x32xf32>
    %76 = arith.mulf %72, %28 : vector<8x32xf32>
    %77 = arith.mulf %71, %75 : vector<8x32xf32>
    %78 = arith.addf %76, %77 : vector<8x32xf32>
    %79 = math.tanh %78 : vector<8x32xf32>
    %80 = arith.mulf %73, %79 : vector<8x32xf32>
    %81 = vector.broadcast %4 : vector<1x32xf32> to vector<8x32xf32>
    %82 = arith.mulf %80, %81 : vector<8x32xf32>
    %cst_28 = arith.constant dense<0.000000e+00> : vector<8xf32>
    %83 = vector.multi_reduction <add>, %82, %cst_28 [1] : vector<8x32xf32> to vector<8xf32>
    %84 = vector.shape_cast %83 : vector<8xf32> to vector<8x1xf32>
    %85 = vector.broadcast %5 : f32 to vector<8x1xf32>
    %86 = arith.addf %84, %85 : vector<8x1xf32>
    %87 = arith.mulf %86, %10 : vector<8x1xf32>
    %88 = vector.shape_cast %87 : vector<8x1xf32> to vector<1x8x1xf32>
    %cst_29 = arith.constant dense<0.000000e+00> : vector<1xf32>
    %89 = vector.multi_reduction <add>, %88, %cst_29 [1, 2] : vector<1x8x1xf32> to vector<1xf32>
    %90 = vector.shape_cast %89 : vector<1xf32> to vector<1x1x1xf32>
    %91 = vector.extract %90[0, 0, 0] : f32 from vector<1x1x1xf32>
    %92 = vector.broadcast %91 : f32 to vector<1x1xf32>
    %93 = arith.mulf %87, %87 : vector<8x1xf32>
    %94 = vector.shape_cast %93 : vector<8x1xf32> to vector<1x8x1xf32>
    %cst_30 = arith.constant dense<0.000000e+00> : vector<1xf32>
    %95 = vector.multi_reduction <add>, %94, %cst_30 [1, 2] : vector<1x8x1xf32> to vector<1xf32>
    %96 = vector.shape_cast %95 : vector<1xf32> to vector<1x1x1xf32>
    %97 = vector.extract %96[0, 0, 0] : f32 from vector<1x1x1xf32>
    %98 = vector.broadcast %97 : f32 to vector<1x1xf32>
    %99 = arith.index_cast %c1_i32 : i32 to index
    %100 = memref.load %arg8[%99] : memref<8xf32, #tpu.memory_space<smem>>
    %101 = arith.index_cast %c1_i32 : i32 to index
    %102 = memref.load %arg9[%101] : memref<8xf32, #tpu.memory_space<smem>>
    %103 = vector.broadcast %cst_24 : f32 to vector<1x1xf32>
    %104 = arith.mulf %103, %98 : vector<1x1xf32>
    %cst_31 = arith.constant 2.000000e+00 : f32
    %105 = vector.broadcast %cst_31 : f32 to vector<1x1xf32>
    %106 = arith.mulf %105, %92 : vector<1x1xf32>
    %107 = vector.broadcast %100 : f32 to vector<1x1xf32>
    %108 = arith.mulf %106, %107 : vector<1x1xf32>
    %109 = arith.subf %104, %108 : vector<1x1xf32>
    %110 = arith.mulf %cst_24, %102 : f32
    %111 = vector.broadcast %110 : f32 to vector<1x1xf32>
    %112 = arith.addf %109, %111 : vector<1x1xf32>
    %113 = vector.broadcast %cst_25 : f32 to vector<1x1xf32>
    %114 = arith.mulf %112, %113 : vector<1x1xf32>
    %115 = arith.addf %62, %114 : vector<1x1xf32>
    %c2_i32 = arith.constant 2 : i32
    %cst_32 = arith.constant dense<0.000000e+00> : vector<8x128xf32>
    %116 = tpu.matmul %80, %1, %cst_32 {dimension_numbers = #tpu.dot_dimension_numbers<[1], [0], [0], [1], [0, 0, 1, 1], [], []>} : vector<8x32xf32>, vector<32x128xf32>, vector<8x128xf32> -> vector<8x128xf32>
    %117 = vector.broadcast %3 : vector<1x128xf32> to vector<8x128xf32>
    %118 = arith.addf %116, %117 : vector<8x128xf32>
    %119 = arith.negf %118 : vector<8x128xf32>
    %120 = math.exp %119 : vector<8x128xf32>
    %cst_33 = arith.constant 1.000000e+00 : f32
    %121 = vector.broadcast %cst_33 : f32 to vector<8x128xf32>
    %122 = arith.addf %121, %120 : vector<8x128xf32>
    %123 = arith.divf %121, %122 : vector<8x128xf32>
    %124 = vector.extract_strided_slice %123 {offsets = [0, 0], sizes = [8, 32], strides = [1, 1]} : vector<8x128xf32> to vector<8x32xf32>
    %125 = vector.extract_strided_slice %123 {offsets = [0, 32], sizes = [8, 32], strides = [1, 1]} : vector<8x128xf32> to vector<8x32xf32>
    %126 = vector.extract_strided_slice %123 {offsets = [0, 96], sizes = [8, 32], strides = [1, 1]} : vector<8x128xf32> to vector<8x32xf32>
    %127 = vector.extract_strided_slice %118 {offsets = [0, 64], sizes = [8, 32], strides = [1, 1]} : vector<8x128xf32> to vector<8x32xf32>
    %128 = math.tanh %127 : vector<8x32xf32>
    %129 = arith.mulf %125, %78 : vector<8x32xf32>
    %130 = arith.mulf %124, %128 : vector<8x32xf32>
    %131 = arith.addf %129, %130 : vector<8x32xf32>
    %132 = math.tanh %131 : vector<8x32xf32>
    %133 = arith.mulf %126, %132 : vector<8x32xf32>
    %134 = vector.broadcast %4 : vector<1x32xf32> to vector<8x32xf32>
    %135 = arith.mulf %133, %134 : vector<8x32xf32>
    %cst_34 = arith.constant dense<0.000000e+00> : vector<8xf32>
    %136 = vector.multi_reduction <add>, %135, %cst_34 [1] : vector<8x32xf32> to vector<8xf32>
    %137 = vector.shape_cast %136 : vector<8xf32> to vector<8x1xf32>
    %138 = vector.broadcast %5 : f32 to vector<8x1xf32>
    %139 = arith.addf %137, %138 : vector<8x1xf32>
    %140 = arith.mulf %139, %10 : vector<8x1xf32>
    %141 = vector.shape_cast %140 : vector<8x1xf32> to vector<1x8x1xf32>
    %cst_35 = arith.constant dense<0.000000e+00> : vector<1xf32>
    %142 = vector.multi_reduction <add>, %141, %cst_35 [1, 2] : vector<1x8x1xf32> to vector<1xf32>
    %143 = vector.shape_cast %142 : vector<1xf32> to vector<1x1x1xf32>
    %144 = vector.extract %143[0, 0, 0] : f32 from vector<1x1x1xf32>
    %145 = vector.broadcast %144 : f32 to vector<1x1xf32>
    %146 = arith.mulf %140, %140 : vector<8x1xf32>
    %147 = vector.shape_cast %146 : vector<8x1xf32> to vector<1x8x1xf32>
    %cst_36 = arith.constant dense<0.000000e+00> : vector<1xf32>
    %148 = vector.multi_reduction <add>, %147, %cst_36 [1, 2] : vector<1x8x1xf32> to vector<1xf32>
    %149 = vector.shape_cast %148 : vector<1xf32> to vector<1x1x1xf32>
    %150 = vector.extract %149[0, 0, 0] : f32 from vector<1x1x1xf32>
    %151 = vector.broadcast %150 : f32 to vector<1x1xf32>
    %152 = arith.index_cast %c2_i32 : i32 to index
    %153 = memref.load %arg8[%152] : memref<8xf32, #tpu.memory_space<smem>>
    %154 = arith.index_cast %c2_i32 : i32 to index
    %155 = memref.load %arg9[%154] : memref<8xf32, #tpu.memory_space<smem>>
    %156 = vector.broadcast %cst_24 : f32 to vector<1x1xf32>
    %157 = arith.mulf %156, %151 : vector<1x1xf32>
    %cst_37 = arith.constant 2.000000e+00 : f32
    %158 = vector.broadcast %cst_37 : f32 to vector<1x1xf32>
    %159 = arith.mulf %158, %145 : vector<1x1xf32>
    %160 = vector.broadcast %153 : f32 to vector<1x1xf32>
    %161 = arith.mulf %159, %160 : vector<1x1xf32>
    %162 = arith.subf %157, %161 : vector<1x1xf32>
    %163 = arith.mulf %cst_24, %155 : f32
    %164 = vector.broadcast %163 : f32 to vector<1x1xf32>
    %165 = arith.addf %162, %164 : vector<1x1xf32>
    %166 = vector.broadcast %cst_25 : f32 to vector<1x1xf32>
    %167 = arith.mulf %165, %166 : vector<1x1xf32>
    %168 = arith.addf %115, %167 : vector<1x1xf32>
    %c3_i32 = arith.constant 3 : i32
    %cst_38 = arith.constant dense<0.000000e+00> : vector<8x128xf32>
    %169 = tpu.matmul %133, %1, %cst_38 {dimension_numbers = #tpu.dot_dimension_numbers<[1], [0], [0], [1], [0, 0, 1, 1], [], []>} : vector<8x32xf32>, vector<32x128xf32>, vector<8x128xf32> -> vector<8x128xf32>
    %170 = vector.broadcast %3 : vector<1x128xf32> to vector<8x128xf32>
    %171 = arith.addf %169, %170 : vector<8x128xf32>
    %172 = arith.negf %171 : vector<8x128xf32>
    %173 = math.exp %172 : vector<8x128xf32>
    %cst_39 = arith.constant 1.000000e+00 : f32
    %174 = vector.broadcast %cst_39 : f32 to vector<8x128xf32>
    %175 = arith.addf %174, %173 : vector<8x128xf32>
    %176 = arith.divf %174, %175 : vector<8x128xf32>
    %177 = vector.extract_strided_slice %176 {offsets = [0, 0], sizes = [8, 32], strides = [1, 1]} : vector<8x128xf32> to vector<8x32xf32>
    %178 = vector.extract_strided_slice %176 {offsets = [0, 32], sizes = [8, 32], strides = [1, 1]} : vector<8x128xf32> to vector<8x32xf32>
    %179 = vector.extract_strided_slice %176 {offsets = [0, 96], sizes = [8, 32], strides = [1, 1]} : vector<8x128xf32> to vector<8x32xf32>
    %180 = vector.extract_strided_slice %171 {offsets = [0, 64], sizes = [8, 32], strides = [1, 1]} : vector<8x128xf32> to vector<8x32xf32>
    %181 = math.tanh %180 : vector<8x32xf32>
    %182 = arith.mulf %178, %131 : vector<8x32xf32>
    %183 = arith.mulf %177, %181 : vector<8x32xf32>
    %184 = arith.addf %182, %183 : vector<8x32xf32>
    %185 = math.tanh %184 : vector<8x32xf32>
    %186 = arith.mulf %179, %185 : vector<8x32xf32>
    %187 = vector.broadcast %4 : vector<1x32xf32> to vector<8x32xf32>
    %188 = arith.mulf %186, %187 : vector<8x32xf32>
    %cst_40 = arith.constant dense<0.000000e+00> : vector<8xf32>
    %189 = vector.multi_reduction <add>, %188, %cst_40 [1] : vector<8x32xf32> to vector<8xf32>
    %190 = vector.shape_cast %189 : vector<8xf32> to vector<8x1xf32>
    %191 = vector.broadcast %5 : f32 to vector<8x1xf32>
    %192 = arith.addf %190, %191 : vector<8x1xf32>
    %193 = arith.mulf %192, %10 : vector<8x1xf32>
    %194 = vector.shape_cast %193 : vector<8x1xf32> to vector<1x8x1xf32>
    %cst_41 = arith.constant dense<0.000000e+00> : vector<1xf32>
    %195 = vector.multi_reduction <add>, %194, %cst_41 [1, 2] : vector<1x8x1xf32> to vector<1xf32>
    %196 = vector.shape_cast %195 : vector<1xf32> to vector<1x1x1xf32>
    %197 = vector.extract %196[0, 0, 0] : f32 from vector<1x1x1xf32>
    %198 = vector.broadcast %197 : f32 to vector<1x1xf32>
    %199 = arith.mulf %193, %193 : vector<8x1xf32>
    %200 = vector.shape_cast %199 : vector<8x1xf32> to vector<1x8x1xf32>
    %cst_42 = arith.constant dense<0.000000e+00> : vector<1xf32>
    %201 = vector.multi_reduction <add>, %200, %cst_42 [1, 2] : vector<1x8x1xf32> to vector<1xf32>
    %202 = vector.shape_cast %201 : vector<1xf32> to vector<1x1x1xf32>
    %203 = vector.extract %202[0, 0, 0] : f32 from vector<1x1x1xf32>
    %204 = vector.broadcast %203 : f32 to vector<1x1xf32>
    %205 = arith.index_cast %c3_i32 : i32 to index
    %206 = memref.load %arg8[%205] : memref<8xf32, #tpu.memory_space<smem>>
    %207 = arith.index_cast %c3_i32 : i32 to index
    %208 = memref.load %arg9[%207] : memref<8xf32, #tpu.memory_space<smem>>
    %209 = vector.broadcast %cst_24 : f32 to vector<1x1xf32>
    %210 = arith.mulf %209, %204 : vector<1x1xf32>
    %cst_43 = arith.constant 2.000000e+00 : f32
    %211 = vector.broadcast %cst_43 : f32 to vector<1x1xf32>
    %212 = arith.mulf %211, %198 : vector<1x1xf32>
    %213 = vector.broadcast %206 : f32 to vector<1x1xf32>
    %214 = arith.mulf %212, %213 : vector<1x1xf32>
    %215 = arith.subf %210, %214 : vector<1x1xf32>
    %216 = arith.mulf %cst_24, %208 : f32
    %217 = vector.broadcast %216 : f32 to vector<1x1xf32>
    %218 = arith.addf %215, %217 : vector<1x1xf32>
    %219 = vector.broadcast %cst_25 : f32 to vector<1x1xf32>
    %220 = arith.mulf %218, %219 : vector<1x1xf32>
    %221 = arith.addf %168, %220 : vector<1x1xf32>
    %c4_i32_44 = arith.constant 4 : i32
    %cst_45 = arith.constant dense<0.000000e+00> : vector<8x128xf32>
    %222 = tpu.matmul %186, %1, %cst_45 {dimension_numbers = #tpu.dot_dimension_numbers<[1], [0], [0], [1], [0, 0, 1, 1], [], []>} : vector<8x32xf32>, vector<32x128xf32>, vector<8x128xf32> -> vector<8x128xf32>
    %223 = vector.broadcast %3 : vector<1x128xf32> to vector<8x128xf32>
    %224 = arith.addf %222, %223 : vector<8x128xf32>
    %225 = arith.negf %224 : vector<8x128xf32>
    %226 = math.exp %225 : vector<8x128xf32>
    %cst_46 = arith.constant 1.000000e+00 : f32
    %227 = vector.broadcast %cst_46 : f32 to vector<8x128xf32>
    %228 = arith.addf %227, %226 : vector<8x128xf32>
    %229 = arith.divf %227, %228 : vector<8x128xf32>
    %230 = vector.extract_strided_slice %229 {offsets = [0, 0], sizes = [8, 32], strides = [1, 1]} : vector<8x128xf32> to vector<8x32xf32>
    %231 = vector.extract_strided_slice %229 {offsets = [0, 32], sizes = [8, 32], strides = [1, 1]} : vector<8x128xf32> to vector<8x32xf32>
    %232 = vector.extract_strided_slice %229 {offsets = [0, 96], sizes = [8, 32], strides = [1, 1]} : vector<8x128xf32> to vector<8x32xf32>
    %233 = vector.extract_strided_slice %224 {offsets = [0, 64], sizes = [8, 32], strides = [1, 1]} : vector<8x128xf32> to vector<8x32xf32>
    %234 = math.tanh %233 : vector<8x32xf32>
    %235 = arith.mulf %231, %184 : vector<8x32xf32>
    %236 = arith.mulf %230, %234 : vector<8x32xf32>
    %237 = arith.addf %235, %236 : vector<8x32xf32>
    %238 = math.tanh %237 : vector<8x32xf32>
    %239 = arith.mulf %232, %238 : vector<8x32xf32>
    %240 = vector.broadcast %4 : vector<1x32xf32> to vector<8x32xf32>
    %241 = arith.mulf %239, %240 : vector<8x32xf32>
    %cst_47 = arith.constant dense<0.000000e+00> : vector<8xf32>
    %242 = vector.multi_reduction <add>, %241, %cst_47 [1] : vector<8x32xf32> to vector<8xf32>
    %243 = vector.shape_cast %242 : vector<8xf32> to vector<8x1xf32>
    %244 = vector.broadcast %5 : f32 to vector<8x1xf32>
    %245 = arith.addf %243, %244 : vector<8x1xf32>
    %246 = arith.mulf %245, %10 : vector<8x1xf32>
    %247 = vector.shape_cast %246 : vector<8x1xf32> to vector<1x8x1xf32>
    %cst_48 = arith.constant dense<0.000000e+00> : vector<1xf32>
    %248 = vector.multi_reduction <add>, %247, %cst_48 [1, 2] : vector<1x8x1xf32> to vector<1xf32>
    %249 = vector.shape_cast %248 : vector<1xf32> to vector<1x1x1xf32>
    %250 = vector.extract %249[0, 0, 0] : f32 from vector<1x1x1xf32>
    %251 = vector.broadcast %250 : f32 to vector<1x1xf32>
    %252 = arith.mulf %246, %246 : vector<8x1xf32>
    %253 = vector.shape_cast %252 : vector<8x1xf32> to vector<1x8x1xf32>
    %cst_49 = arith.constant dense<0.000000e+00> : vector<1xf32>
    %254 = vector.multi_reduction <add>, %253, %cst_49 [1, 2] : vector<1x8x1xf32> to vector<1xf32>
    %255 = vector.shape_cast %254 : vector<1xf32> to vector<1x1x1xf32>
    %256 = vector.extract %255[0, 0, 0] : f32 from vector<1x1x1xf32>
    %257 = vector.broadcast %256 : f32 to vector<1x1xf32>
    %258 = arith.index_cast %c4_i32_44 : i32 to index
    %259 = memref.load %arg8[%258] : memref<8xf32, #tpu.memory_space<smem>>
    %260 = arith.index_cast %c4_i32_44 : i32 to index
    %261 = memref.load %arg9[%260] : memref<8xf32, #tpu.memory_space<smem>>
    %262 = vector.broadcast %cst_24 : f32 to vector<1x1xf32>
    %263 = arith.mulf %262, %257 : vector<1x1xf32>
    %cst_50 = arith.constant 2.000000e+00 : f32
    %264 = vector.broadcast %cst_50 : f32 to vector<1x1xf32>
    %265 = arith.mulf %264, %251 : vector<1x1xf32>
    %266 = vector.broadcast %259 : f32 to vector<1x1xf32>
    %267 = arith.mulf %265, %266 : vector<1x1xf32>
    %268 = arith.subf %263, %267 : vector<1x1xf32>
    %269 = arith.mulf %cst_24, %261 : f32
    %270 = vector.broadcast %269 : f32 to vector<1x1xf32>
    %271 = arith.addf %268, %270 : vector<1x1xf32>
    %272 = vector.broadcast %cst_25 : f32 to vector<1x1xf32>
    %273 = arith.mulf %271, %272 : vector<1x1xf32>
    %274 = arith.addf %221, %273 : vector<1x1xf32>
    %c5_i32 = arith.constant 5 : i32
    %cst_51 = arith.constant dense<0.000000e+00> : vector<8x128xf32>
    %275 = tpu.matmul %239, %1, %cst_51 {dimension_numbers = #tpu.dot_dimension_numbers<[1], [0], [0], [1], [0, 0, 1, 1], [], []>} : vector<8x32xf32>, vector<32x128xf32>, vector<8x128xf32> -> vector<8x128xf32>
    %276 = vector.broadcast %3 : vector<1x128xf32> to vector<8x128xf32>
    %277 = arith.addf %275, %276 : vector<8x128xf32>
    %278 = arith.negf %277 : vector<8x128xf32>
    %279 = math.exp %278 : vector<8x128xf32>
    %cst_52 = arith.constant 1.000000e+00 : f32
    %280 = vector.broadcast %cst_52 : f32 to vector<8x128xf32>
    %281 = arith.addf %280, %279 : vector<8x128xf32>
    %282 = arith.divf %280, %281 : vector<8x128xf32>
    %283 = vector.extract_strided_slice %282 {offsets = [0, 0], sizes = [8, 32], strides = [1, 1]} : vector<8x128xf32> to vector<8x32xf32>
    %284 = vector.extract_strided_slice %282 {offsets = [0, 32], sizes = [8, 32], strides = [1, 1]} : vector<8x128xf32> to vector<8x32xf32>
    %285 = vector.extract_strided_slice %282 {offsets = [0, 96], sizes = [8, 32], strides = [1, 1]} : vector<8x128xf32> to vector<8x32xf32>
    %286 = vector.extract_strided_slice %277 {offsets = [0, 64], sizes = [8, 32], strides = [1, 1]} : vector<8x128xf32> to vector<8x32xf32>
    %287 = math.tanh %286 : vector<8x32xf32>
    %288 = arith.mulf %284, %237 : vector<8x32xf32>
    %289 = arith.mulf %283, %287 : vector<8x32xf32>
    %290 = arith.addf %288, %289 : vector<8x32xf32>
    %291 = math.tanh %290 : vector<8x32xf32>
    %292 = arith.mulf %285, %291 : vector<8x32xf32>
    %293 = vector.broadcast %4 : vector<1x32xf32> to vector<8x32xf32>
    %294 = arith.mulf %292, %293 : vector<8x32xf32>
    %cst_53 = arith.constant dense<0.000000e+00> : vector<8xf32>
    %295 = vector.multi_reduction <add>, %294, %cst_53 [1] : vector<8x32xf32> to vector<8xf32>
    %296 = vector.shape_cast %295 : vector<8xf32> to vector<8x1xf32>
    %297 = vector.broadcast %5 : f32 to vector<8x1xf32>
    %298 = arith.addf %296, %297 : vector<8x1xf32>
    %299 = arith.mulf %298, %10 : vector<8x1xf32>
    %300 = vector.shape_cast %299 : vector<8x1xf32> to vector<1x8x1xf32>
    %cst_54 = arith.constant dense<0.000000e+00> : vector<1xf32>
    %301 = vector.multi_reduction <add>, %300, %cst_54 [1, 2] : vector<1x8x1xf32> to vector<1xf32>
    %302 = vector.shape_cast %301 : vector<1xf32> to vector<1x1x1xf32>
    %303 = vector.extract %302[0, 0, 0] : f32 from vector<1x1x1xf32>
    %304 = vector.broadcast %303 : f32 to vector<1x1xf32>
    %305 = arith.mulf %299, %299 : vector<8x1xf32>
    %306 = vector.shape_cast %305 : vector<8x1xf32> to vector<1x8x1xf32>
    %cst_55 = arith.constant dense<0.000000e+00> : vector<1xf32>
    %307 = vector.multi_reduction <add>, %306, %cst_55 [1, 2] : vector<1x8x1xf32> to vector<1xf32>
    %308 = vector.shape_cast %307 : vector<1xf32> to vector<1x1x1xf32>
    %309 = vector.extract %308[0, 0, 0] : f32 from vector<1x1x1xf32>
    %310 = vector.broadcast %309 : f32 to vector<1x1xf32>
    %311 = arith.index_cast %c5_i32 : i32 to index
    %312 = memref.load %arg8[%311] : memref<8xf32, #tpu.memory_space<smem>>
    %313 = arith.index_cast %c5_i32 : i32 to index
    %314 = memref.load %arg9[%313] : memref<8xf32, #tpu.memory_space<smem>>
    %315 = vector.broadcast %cst_24 : f32 to vector<1x1xf32>
    %316 = arith.mulf %315, %310 : vector<1x1xf32>
    %cst_56 = arith.constant 2.000000e+00 : f32
    %317 = vector.broadcast %cst_56 : f32 to vector<1x1xf32>
    %318 = arith.mulf %317, %304 : vector<1x1xf32>
    %319 = vector.broadcast %312 : f32 to vector<1x1xf32>
    %320 = arith.mulf %318, %319 : vector<1x1xf32>
    %321 = arith.subf %316, %320 : vector<1x1xf32>
    %322 = arith.mulf %cst_24, %314 : f32
    %323 = vector.broadcast %322 : f32 to vector<1x1xf32>
    %324 = arith.addf %321, %323 : vector<1x1xf32>
    %325 = vector.broadcast %cst_25 : f32 to vector<1x1xf32>
    %326 = arith.mulf %324, %325 : vector<1x1xf32>
    %327 = arith.addf %274, %326 : vector<1x1xf32>
    %c6_i32 = arith.constant 6 : i32
    %cst_57 = arith.constant dense<0.000000e+00> : vector<8x128xf32>
    %328 = tpu.matmul %292, %1, %cst_57 {dimension_numbers = #tpu.dot_dimension_numbers<[1], [0], [0], [1], [0, 0, 1, 1], [], []>} : vector<8x32xf32>, vector<32x128xf32>, vector<8x128xf32> -> vector<8x128xf32>
    %329 = vector.broadcast %3 : vector<1x128xf32> to vector<8x128xf32>
    %330 = arith.addf %328, %329 : vector<8x128xf32>
    %331 = arith.negf %330 : vector<8x128xf32>
    %332 = math.exp %331 : vector<8x128xf32>
    %cst_58 = arith.constant 1.000000e+00 : f32
    %333 = vector.broadcast %cst_58 : f32 to vector<8x128xf32>
    %334 = arith.addf %333, %332 : vector<8x128xf32>
    %335 = arith.divf %333, %334 : vector<8x128xf32>
    %336 = vector.extract_strided_slice %335 {offsets = [0, 0], sizes = [8, 32], strides = [1, 1]} : vector<8x128xf32> to vector<8x32xf32>
    %337 = vector.extract_strided_slice %335 {offsets = [0, 32], sizes = [8, 32], strides = [1, 1]} : vector<8x128xf32> to vector<8x32xf32>
    %338 = vector.extract_strided_slice %335 {offsets = [0, 96], sizes = [8, 32], strides = [1, 1]} : vector<8x128xf32> to vector<8x32xf32>
    %339 = vector.extract_strided_slice %330 {offsets = [0, 64], sizes = [8, 32], strides = [1, 1]} : vector<8x128xf32> to vector<8x32xf32>
    %340 = math.tanh %339 : vector<8x32xf32>
    %341 = arith.mulf %337, %290 : vector<8x32xf32>
    %342 = arith.mulf %336, %340 : vector<8x32xf32>
    %343 = arith.addf %341, %342 : vector<8x32xf32>
    %344 = math.tanh %343 : vector<8x32xf32>
    %345 = arith.mulf %338, %344 : vector<8x32xf32>
    %346 = vector.broadcast %4 : vector<1x32xf32> to vector<8x32xf32>
    %347 = arith.mulf %345, %346 : vector<8x32xf32>
    %cst_59 = arith.constant dense<0.000000e+00> : vector<8xf32>
    %348 = vector.multi_reduction <add>, %347, %cst_59 [1] : vector<8x32xf32> to vector<8xf32>
    %349 = vector.shape_cast %348 : vector<8xf32> to vector<8x1xf32>
    %350 = vector.broadcast %5 : f32 to vector<8x1xf32>
    %351 = arith.addf %349, %350 : vector<8x1xf32>
    %352 = arith.mulf %351, %10 : vector<8x1xf32>
    %353 = vector.shape_cast %352 : vector<8x1xf32> to vector<1x8x1xf32>
    %cst_60 = arith.constant dense<0.000000e+00> : vector<1xf32>
    %354 = vector.multi_reduction <add>, %353, %cst_60 [1, 2] : vector<1x8x1xf32> to vector<1xf32>
    %355 = vector.shape_cast %354 : vector<1xf32> to vector<1x1x1xf32>
    %356 = vector.extract %355[0, 0, 0] : f32 from vector<1x1x1xf32>
    %357 = vector.broadcast %356 : f32 to vector<1x1xf32>
    %358 = arith.mulf %352, %352 : vector<8x1xf32>
    %359 = vector.shape_cast %358 : vector<8x1xf32> to vector<1x8x1xf32>
    %cst_61 = arith.constant dense<0.000000e+00> : vector<1xf32>
    %360 = vector.multi_reduction <add>, %359, %cst_61 [1, 2] : vector<1x8x1xf32> to vector<1xf32>
    %361 = vector.shape_cast %360 : vector<1xf32> to vector<1x1x1xf32>
    %362 = vector.extract %361[0, 0, 0] : f32 from vector<1x1x1xf32>
    %363 = vector.broadcast %362 : f32 to vector<1x1xf32>
    %364 = arith.index_cast %c6_i32 : i32 to index
    %365 = memref.load %arg8[%364] : memref<8xf32, #tpu.memory_space<smem>>
    %366 = arith.index_cast %c6_i32 : i32 to index
    %367 = memref.load %arg9[%366] : memref<8xf32, #tpu.memory_space<smem>>
    %368 = vector.broadcast %cst_24 : f32 to vector<1x1xf32>
    %369 = arith.mulf %368, %363 : vector<1x1xf32>
    %cst_62 = arith.constant 2.000000e+00 : f32
    %370 = vector.broadcast %cst_62 : f32 to vector<1x1xf32>
    %371 = arith.mulf %370, %357 : vector<1x1xf32>
    %372 = vector.broadcast %365 : f32 to vector<1x1xf32>
    %373 = arith.mulf %371, %372 : vector<1x1xf32>
    %374 = arith.subf %369, %373 : vector<1x1xf32>
    %375 = arith.mulf %cst_24, %367 : f32
    %376 = vector.broadcast %375 : f32 to vector<1x1xf32>
    %377 = arith.addf %374, %376 : vector<1x1xf32>
    %378 = vector.broadcast %cst_25 : f32 to vector<1x1xf32>
    %379 = arith.mulf %377, %378 : vector<1x1xf32>
    %380 = arith.addf %327, %379 : vector<1x1xf32>
    %c7_i32 = arith.constant 7 : i32
    %cst_63 = arith.constant dense<0.000000e+00> : vector<8x128xf32>
    %381 = tpu.matmul %345, %1, %cst_63 {dimension_numbers = #tpu.dot_dimension_numbers<[1], [0], [0], [1], [0, 0, 1, 1], [], []>} : vector<8x32xf32>, vector<32x128xf32>, vector<8x128xf32> -> vector<8x128xf32>
    %382 = vector.broadcast %3 : vector<1x128xf32> to vector<8x128xf32>
    %383 = arith.addf %381, %382 : vector<8x128xf32>
    %384 = arith.negf %383 : vector<8x128xf32>
    %385 = math.exp %384 : vector<8x128xf32>
    %cst_64 = arith.constant 1.000000e+00 : f32
    %386 = vector.broadcast %cst_64 : f32 to vector<8x128xf32>
    %387 = arith.addf %386, %385 : vector<8x128xf32>
    %388 = arith.divf %386, %387 : vector<8x128xf32>
    %389 = vector.extract_strided_slice %388 {offsets = [0, 0], sizes = [8, 32], strides = [1, 1]} : vector<8x128xf32> to vector<8x32xf32>
    %390 = vector.extract_strided_slice %388 {offsets = [0, 32], sizes = [8, 32], strides = [1, 1]} : vector<8x128xf32> to vector<8x32xf32>
    %391 = vector.extract_strided_slice %388 {offsets = [0, 96], sizes = [8, 32], strides = [1, 1]} : vector<8x128xf32> to vector<8x32xf32>
    %392 = vector.extract_strided_slice %383 {offsets = [0, 64], sizes = [8, 32], strides = [1, 1]} : vector<8x128xf32> to vector<8x32xf32>
    %393 = math.tanh %392 : vector<8x32xf32>
    %394 = arith.mulf %390, %343 : vector<8x32xf32>
    %395 = arith.mulf %389, %393 : vector<8x32xf32>
    %396 = arith.addf %394, %395 : vector<8x32xf32>
    %397 = math.tanh %396 : vector<8x32xf32>
    %398 = arith.mulf %391, %397 : vector<8x32xf32>
    %399 = vector.broadcast %4 : vector<1x32xf32> to vector<8x32xf32>
    %400 = arith.mulf %398, %399 : vector<8x32xf32>
    %cst_65 = arith.constant dense<0.000000e+00> : vector<8xf32>
    %401 = vector.multi_reduction <add>, %400, %cst_65 [1] : vector<8x32xf32> to vector<8xf32>
    %402 = vector.shape_cast %401 : vector<8xf32> to vector<8x1xf32>
    %403 = vector.broadcast %5 : f32 to vector<8x1xf32>
    %404 = arith.addf %402, %403 : vector<8x1xf32>
    %405 = arith.mulf %404, %10 : vector<8x1xf32>
    %406 = vector.shape_cast %405 : vector<8x1xf32> to vector<1x8x1xf32>
    %cst_66 = arith.constant dense<0.000000e+00> : vector<1xf32>
    %407 = vector.multi_reduction <add>, %406, %cst_66 [1, 2] : vector<1x8x1xf32> to vector<1xf32>
    %408 = vector.shape_cast %407 : vector<1xf32> to vector<1x1x1xf32>
    %409 = vector.extract %408[0, 0, 0] : f32 from vector<1x1x1xf32>
    %410 = vector.broadcast %409 : f32 to vector<1x1xf32>
    %411 = arith.mulf %405, %405 : vector<8x1xf32>
    %412 = vector.shape_cast %411 : vector<8x1xf32> to vector<1x8x1xf32>
    %cst_67 = arith.constant dense<0.000000e+00> : vector<1xf32>
    %413 = vector.multi_reduction <add>, %412, %cst_67 [1, 2] : vector<1x8x1xf32> to vector<1xf32>
    %414 = vector.shape_cast %413 : vector<1xf32> to vector<1x1x1xf32>
    %415 = vector.extract %414[0, 0, 0] : f32 from vector<1x1x1xf32>
    %416 = vector.broadcast %415 : f32 to vector<1x1xf32>
    %417 = arith.index_cast %c7_i32 : i32 to index
    %418 = memref.load %arg8[%417] : memref<8xf32, #tpu.memory_space<smem>>
    %419 = arith.index_cast %c7_i32 : i32 to index
    %420 = memref.load %arg9[%419] : memref<8xf32, #tpu.memory_space<smem>>
    %421 = vector.broadcast %cst_24 : f32 to vector<1x1xf32>
    %422 = arith.mulf %421, %416 : vector<1x1xf32>
    %cst_68 = arith.constant 2.000000e+00 : f32
    %423 = vector.broadcast %cst_68 : f32 to vector<1x1xf32>
    %424 = arith.mulf %423, %410 : vector<1x1xf32>
    %425 = vector.broadcast %418 : f32 to vector<1x1xf32>
    %426 = arith.mulf %424, %425 : vector<1x1xf32>
    %427 = arith.subf %422, %426 : vector<1x1xf32>
    %428 = arith.mulf %cst_24, %420 : f32
    %429 = vector.broadcast %428 : f32 to vector<1x1xf32>
    %430 = arith.addf %427, %429 : vector<1x1xf32>
    %431 = vector.broadcast %cst_25 : f32 to vector<1x1xf32>
    %432 = arith.mulf %430, %431 : vector<1x1xf32>
    %433 = arith.addf %380, %432 : vector<1x1xf32>
    %c7_i32_69 = arith.constant 7 : i32
    %c0_70 = arith.constant 0 : index
    %c0_71 = arith.constant 0 : index
    %434 = vector.load %arg10[%c0_70, %c0_71] : memref<1x1xf32, #tpu.memory_space<vmem>>, vector<1x1xf32>
    tpu.vector_store %arg10[%c0_70, %c0_71], %433 {strides = array<i32>} : memref<1x1xf32, #tpu.memory_space<vmem>>, vector<1x1xf32>,
    return
  }
}

</mosaic_0001>

<llo_original>
// kernel: tpu_custom_call.1
$region0: #{tpu_custom_call.1}
  #allocation0 [shape = 'u32[]', space=smem, size = 0x4, offset = 0x4, fixed_abs, tag = 'smem constant byte address 0x4 - core index']
  #allocation1 [shape = 'u32[72,128]{1,0:T(1,128)}', space=vmem, size = 0x9000, scoped, tag = 'internal scratch']
  #allocation2 [shape = 'f32[1]{0:T(128)S(6)}', space=smem, size = 0x200, scoped, tag = 'scoped memory for tpu_custom_call.1']
  %s0 = inlined_call_operand.hbm [shape: f32[32,128], index: 0, kind: input, shape index: {}]
  %s1 = inlined_call_operand.hbm [shape: f32[32,128], index: 1, kind: input, shape index: {}]
  %s2 = inlined_call_operand.vmem [shape: f32[1,128], index: 2, kind: input, shape index: {}]
  %s3 = inlined_call_operand.vmem [shape: f32[1,128], index: 3, kind: input, shape index: {}]
  %s4 = inlined_call_operand.vmem [shape: f32[1,32], index: 4, kind: input, shape index: {}]
  %s5 = inlined_call_operand.hbm [shape: f32[8,32], index: 5, kind: input, shape index: {}]
  %s6 = inlined_call_operand.hbm [shape: f32[8,32], index: 6, kind: input, shape index: {}]
  %s7 = inlined_call_operand.<no memory space> [shape: f32[1], index: 7, kind: input, shape index: {}]
  %s8 = inlined_call_operand.vmem [shape: f32[8], index: 8, kind: input, shape index: {}]
  %s9 = inlined_call_operand.vmem [shape: f32[8], index: 9, kind: input, shape index: {}]
  %s10 = inlined_call_operand.hbm [shape: f32[1,1], index: 10, kind: output, shape index: {}]
  %s11 = sld [smem:[#allocation0]]
  $region74: #{tpu_custom_call.1} parent=0
    _
  %s13 = ssub.s32 1, %s11
  %s14 = scalar_select 0, %s13, %s11
  %15 = sst [smem:[#allocation2]] %s7
  $region1: #{tpu_custom_call.1} parent=0
    #allocation3 [shape = 'u8[16384]{0}', space=vmem, size = 0x4000, scoped, tag = 'input window, operand 0, single buffered']
    #allocation4 [shape = 's32[1]{0}', space=sflag, size = 0x4, scoped, tag = 'scoped memory for tpu_custom_call.1']
    #allocation5 [shape = 's32[1]{0}', space=sflag, size = 0x4, scoped, tag = 'scoped memory for tpu_custom_call.1']
    #allocation6 [shape = 's32[1]{0}', space=sflag, size = 0x4, scoped, tag = 'scoped memory for tpu_custom_call.1']
    #allocation7 [shape = 'u8[16384]{0}', space=vmem, size = 0x4000, scoped, tag = 'input window, operand 1, single buffered']
    #allocation8 [shape = 's32[1]{0}', space=sflag, size = 0x4, scoped, tag = 'scoped memory for tpu_custom_call.1']
    #allocation9 [shape = 'u8[4096]{0}', space=vmem, size = 0x1000, scoped, tag = 'input window, operand 5, single buffered']
    #allocation10 [shape = 'u8[4096]{0}', space=vmem, size = 0x1000, scoped, tag = 'input window, operand 6, single buffered']
    #allocation11 [shape = 's32[1]{0}', space=sflag, size = 0x4, scoped, tag = 'scoped memory for tpu_custom_call.1']
    #allocation12 [shape = 'u8[512]{0}', space=smem, size = 0x200, scoped, tag = 'input window, operand 8, single buffered']
    #allocation13 [shape = 'u8[512]{0}', space=smem, size = 0x200, scoped, tag = 'input window, operand 9, single buffered']
    #allocation14 [shape = 's32[1]{0}', space=sflag, size = 0x4, scoped, tag = 'scoped memory for tpu_custom_call.1']
    #allocation15 [shape = 'u8[512]{0}', space=vmem, size = 0x400, scoped, tag = 'output window, operand 0, single buffered']
    %16 = vsyncpa [#allocation4], 0
    %17 = vsyncpa [#allocation8], 0
    %18 = vsyncpa [#allocation11], 0
    %19 = vsyncpa [#allocation6], 0
    %20 = vsyncpa [#allocation14], 0
    %21 = vsyncpa [#allocation5], 0
    // Predicated region
    $region2: #{tpu_custom_call.1} parent=1 // pred_check
      _
    $region3: #{tpu_custom_call.1} parent=1 // pred_check_branch
      %23 = sbr.rel (0) target = $region5
    $region4: #{tpu_custom_call.1} parent=1 // pred_region
      %25 = vsyncadd [#allocation4], 0
      %s26 = sshll.u32 %s0, 4
      %s27 = int_to_ptr.hbm [resolvable:$true] %s26
      %s28 = sshll.u32 [#allocation3], 4
      %s29 = int_to_ptr.vmem [resolvable:$true] %s28
      %34 = dma.hbm_to_vmem [thread:$0]  %s27, 512, %s29, [#allocation4], 128, 128, 8
    $region5: #{tpu_custom_call.1} parent=1 // pred_fallthru
      _
    // Predicated region
    $region6: #{tpu_custom_call.1} parent=1 // pred_check
      _
    $region7: #{tpu_custom_call.1} parent=1 // pred_check_branch
      %36 = sbr.rel (0) target = $region9
    $region8: #{tpu_custom_call.1} parent=1 // pred_region
      %38 = vsyncadd [#allocation8], 0
      %s39 = sshll.u32 %s1, 4
      %s40 = int_to_ptr.hbm [resolvable:$true] %s39
      %s41 = sshll.u32 [#allocation7], 4
      %s42 = int_to_ptr.vmem [resolvable:$true] %s41
      %47 = dma.hbm_to_vmem [thread:$0]  %s40, 512, %s42, [#allocation8], 128, 128, 8
    $region9: #{tpu_custom_call.1} parent=1 // pred_fallthru
      _
    // Predicated region
    $region10: #{tpu_custom_call.1} parent=1 // pred_check
      _
    $region11: #{tpu_custom_call.1} parent=1 // pred_check_branch
      %49 = sbr.rel (0) target = $region13
    $region12: #{tpu_custom_call.1} parent=1 // pred_region
      _
    $region13: #{tpu_custom_call.1} parent=1 // pred_fallthru
      _
    // Predicated region
    $region14: #{tpu_custom_call.1} parent=1 // pred_check
      _
    $region15: #{tpu_custom_call.1} parent=1 // pred_check_branch
      %51 = sbr.rel (0) target = $region17
    $region16: #{tpu_custom_call.1} parent=1 // pred_region
      _
    $region17: #{tpu_custom_call.1} parent=1 // pred_fallthru
      _
    // Predicated region
    $region18: #{tpu_custom_call.1} parent=1 // pred_check
      _
    $region19: #{tpu_custom_call.1} parent=1 // pred_check_branch
      %53 = sbr.rel (0) target = $region21
    $region20: #{tpu_custom_call.1} parent=1 // pred_region
      _
    $region21: #{tpu_custom_call.1} parent=1 // pred_fallthru
      _
    // Predicated region
    $region22: #{tpu_custom_call.1} parent=1 // pred_check
      _
    $region23: #{tpu_custom_call.1} parent=1 // pred_check_branch
      %55 = sbr.rel (0) target = $region25
    $region24: #{tpu_custom_call.1} parent=1 // pred_region
      %57 = vsyncadd [#allocation8], 0
      %s59 = sshll.u32 %s5, 4
      %s60 = int_to_ptr.hbm [resolvable:$true] %s59
      %s61 = sshll.u32 [#allocation9], 4
      %s62 = int_to_ptr.vmem [resolvable:$true] %s61
      %64 = dma.hbm_to_vmem [thread:$0]  %s60, 128, %s62, [#allocation8]
    $region25: #{tpu_custom_call.1} parent=1 // pred_fallthru
      _
    // Predicated region
    $region26: #{tpu_custom_call.1} parent=1 // pred_check
      _
    $region27: #{tpu_custom_call.1} parent=1 // pred_check_branch
      %66 = sbr.rel (0) target = $region29
    $region28: #{tpu_custom_call.1} parent=1 // pred_region
      %68 = vsyncadd [#allocation11], 0
      %s70 = sshll.u32 %s6, 4
      %s71 = int_to_ptr.hbm [resolvable:$true] %s70
      %s72 = sshll.u32 [#allocation10], 4
      %s73 = int_to_ptr.vmem [resolvable:$true] %s72
      %75 = dma.hbm_to_vmem [thread:$0]  %s71, 128, %s73, [#allocation11]
    $region29: #{tpu_custom_call.1} parent=1 // pred_fallthru
      _
    // Predicated region
    $region30: #{tpu_custom_call.1} parent=1 // pred_check
      _
    $region31: #{tpu_custom_call.1} parent=1 // pred_check_branch
      %77 = sbr.rel (0) target = $region33
    $region32: #{tpu_custom_call.1} parent=1 // pred_region
      _
    $region33: #{tpu_custom_call.1} parent=1 // pred_fallthru
      _
    // Predicated region
    $region34: #{tpu_custom_call.1} parent=1 // pred_check
      _
    $region35: #{tpu_custom_call.1} parent=1 // pred_check_branch
      %79 = sbr.rel (0) target = $region37
    $region36: #{tpu_custom_call.1} parent=1 // pred_region
      %81 = vsyncadd [#allocation6], 0
      %s83 = sshll.u32 %s8, 4
      %s84 = int_to_ptr.vmem [resolvable:$true] %s83
      %86 = dma.vmem_to_smem %s84, 16, [#allocation12], [#allocation6]
    $region37: #{tpu_custom_call.1} parent=1 // pred_fallthru
      _
    // Predicated region
    $region38: #{tpu_custom_call.1} parent=1 // pred_check
      _
    $region39: #{tpu_custom_call.1} parent=1 // pred_check_branch
      %88 = sbr.rel (0) target = $region41
    $region40: #{tpu_custom_call.1} parent=1 // pred_region
      %90 = vsyncadd [#allocation14], 0
      %s92 = sshll.u32 %s9, 4
      %s93 = int_to_ptr.vmem [resolvable:$true] %s92
      %95 = dma.vmem_to_smem %s93, 16, [#allocation13], [#allocation14]
    $region41: #{tpu_custom_call.1} parent=1 // pred_fallthru
      _
    // Predicated region
    $region42: #{tpu_custom_call.1} parent=1 // pred_check
      _
    $region43: #{tpu_custom_call.1} parent=1 // pred_check_branch
      %97 = sbr.rel (0) target = $region45
    $region44: #{tpu_custom_call.1} parent=1 // pred_region
      %99 = dma.done [#allocation4], 512
    $region45: #{tpu_custom_call.1} parent=1 // pred_fallthru
      _
    // Predicated region
    $region46: #{tpu_custom_call.1} parent=1 // pred_check
      _
    $region47: #{tpu_custom_call.1} parent=1 // pred_check_branch
      %101 = sbr.rel (0) target = $region49
    $region48: #{tpu_custom_call.1} parent=1 // pred_region
      %103 = dma.done [#allocation8], 512
    $region49: #{tpu_custom_call.1} parent=1 // pred_fallthru
      _
    // Predicated region
    $region50: #{tpu_custom_call.1} parent=1 // pred_check
      _
    $region51: #{tpu_custom_call.1} parent=1 // pred_check_branch
      %105 = sbr.rel (0) target = $region53
    $region52: #{tpu_custom_call.1} parent=1 // pred_region
      %107 = dma.done [#allocation8], 128
    $region53: #{tpu_custom_call.1} parent=1 // pred_fallthru
      _
    // Predicated region
    $region54: #{tpu_custom_call.1} parent=1 // pred_check
      _
    $region55: #{tpu_custom_call.1} parent=1 // pred_check_branch
      %109 = sbr.rel (0) target = $region57
    $region56: #{tpu_custom_call.1} parent=1 // pred_region
      %111 = dma.done [#allocation11], 128
    $region57: #{tpu_custom_call.1} parent=1 // pred_fallthru
      _
    // Predicated region
    $region58: #{tpu_custom_call.1} parent=1 // pred_check
      _
    $region59: #{tpu_custom_call.1} parent=1 // pred_check_branch
      %113 = sbr.rel (0) target = $region61
    $region60: #{tpu_custom_call.1} parent=1 // pred_region
      %115 = dma.done [#allocation6], 16
    $region61: #{tpu_custom_call.1} parent=1 // pred_fallthru
      _
    // Predicated region
    $region62: #{tpu_custom_call.1} parent=1 // pred_check
      _
    $region63: #{tpu_custom_call.1} parent=1 // pred_check_branch
      %117 = sbr.rel (0) target = $region65
    $region64: #{tpu_custom_call.1} parent=1 // pred_region
      %119 = dma.done [#allocation14], 16
    $region65: #{tpu_custom_call.1} parent=1 // pred_fallthru
      _
    %120 = sfence
    %v121 = vld [vmem:[#allocation3] sm:$0xff]
    %v122 = vld [vmem:[#allocation3 + $0x8] sm:$0xff]
    %v123 = vld [vmem:[#allocation3 + $0x10] sm:$0xff]
    %v124 = vld [vmem:[#allocation3 + $0x18] sm:$0xff]
    %v125 = vld [vmem:[#allocation7] sm:$0xff]
    %v126 = vld [vmem:[#allocation7 + $0x8] sm:$0xff]
    %v127 = vld [vmem:[#allocation7 + $0x10] sm:$0xff]
    %v128 = vld [vmem:[#allocation7 + $0x18] sm:$0xff]
    %v129 = vld [vmem:[%s2] sm:$0x1]
    %v130 = vld [vmem:[%s3] sm:$0x1]
    %v131 = vld [vmem:[%s4] sm:$0x1]
    %s132 = sld [smem:[#allocation2]]
    %v133 = vlaneseq
    %v134 = vshrl.u32 %v133, 7
    %vm135 = vcmp.lt.s32.totalorder %v134, 4
    %v136 = vsel %vm135, 1, 0
    %v137 = vcvt.s32.f32 %v136
    %v138 = vld [vmem:[#allocation9] sm:$0xff]
    %v139 = vld [vmem:[#allocation10] sm:$0xff]
    %v141 = vperm.slane %v129, 0
    %vm143 = vcmask 261120
    %v145 = vsel %vm143, %v138, 0
    %147 = vmatpush.msra.mxu0 0.0
    %148 = vmatpush.msra.mxu0 0.0
    %149 = vmatpush.msra.mxu0 0.0
    %150 = vmatpush.msra.mxu0 0.0
    %151 = vmatpush.msra.mxu0 0.0
    %152 = vmatpush.msra.mxu0 0.0
    %153 = vmatpush.msra.mxu0 0.0
    %154 = vmatpush.msra.mxu0 0.0
    %155 = vmatpush.msra.mxu0 0.0
    %156 = vmatpush.msra.mxu0 0.0
    %157 = vmatpush.msra.mxu0 0.0
    %158 = vmatpush.msra.mxu0 0.0
    %159 = vmatpush.msra.mxu0 %v124
    %160 = vmatpush.msra.mxu0 %v123
    %161 = vmatpush.msra.mxu0 %v122
    %162 = vmatpush.msra.mxu0 %v121
    %163 = vmatmul.f32.gmra.mxu0 %v145
    %v164 = vpop.f32.mrf.mxu0
    %v165 = vadd.f32 %v141, %v164
    %166 = vdwg.mxu0
    %v167 = vxor.u32 %v165, 2147483648
    %v168 = vmul.f32 %v167, 1.442695
    %v169 = vpow.pop %v168
    %v170 = vadd.f32 %v169, 1.0
    %v171 = vrcp.pop %v170
    %v172 = vmul.f32 %v170, %v171
    %v173 = vsub.f32 1.0, %v172
    %v174 = vmul.f32 %v171, %v173
    %v175 = vadd.f32 %v171, %v174
    %vm176 = vweird.f32 %v170
    %vm177 = vweird.f32 %v171
    %vm178 = vmor %vm176, %vm177
    %v179 = vsel %vm178, %v171, %v175
    %v180 = vand.u32 2147483647, %v170
    %vm181 = vcmp.eq.f32.partialorder %v180, 8.507059e+37
    %v182 = vand.u32 %v170, 2147483648
    %v183 = vor.u32 1.1754944e-38, %v182
    %v184 = vsel %vm181, %v183, %v179
    %v185 = vmul.f32 1.0, %v184
    %v186 = vtanh.pop %v165
    %188 = vrot.lane.b32.xlu0 %v139, 32
    %v189 = vpop.permute.xlu0 %188
    %v191 = vmul.f32 %v185, %v189
    %193 = vrot.lane.b32.xlu0 %v186, 64
    %v194 = vpop.permute.xlu0 %193
    %v196 = vmul.f32 %v185, %v194
    %198 = vrot.lane.b32.xlu0 %v196, 32
    %v199 = vpop.permute.xlu0 %198
    %v201 = vadd.f32 %v191, %v199
    %v202 = vtanh.pop %v201
    %204 = vrot.lane.b32.xlu0 %v202, 64
    %v205 = vpop.permute.xlu0 %204
    %v207 = vmul.f32 %v185, %v205
    %v209 = vperm.slane %v131, 0
    %210 = vrot.lane.b32.xlu0 %v209, 96
    %v211 = vpop.permute.xlu0 %210
    %v213 = vmul.f32 %v207, %v211
    %215 = vrot.lane.b32.xlu0 %v213, 32
    %v216 = vpop.permute.xlu0 %215
    %v218 = vsel %vm143, %v216, 0.0
    %219 = vadd.xlane.f32.xlu0 %v218
    %v220 = vpop.xlane.xlu0 %219
    %v221 = vstv %s132
    %v222 = vadd.f32 %v220, %v221
    %v223 = vmul.f32 %v222, %v137
    %vm224 = vcmask 7168
    %v225 = vsel %vm224, %v223, 0.0
    %226 = vadd.xlane.f32.xlu0 %v225
    %v227 = vpop.xlane.xlu0 %226
    %v228 = vrot.slane %v227, 4
    %v229 = vadd.f32 %v227, %v228
    %v230 = vrot.slane %v229, 2
    %v231 = vadd.f32 %v229, %v230
    %v232 = vrot.slane %v231, 1
    %v233 = vadd.f32 %v231, %v232
    %s234 = vtos %v233
    %v235 = vstv %s234
    %v236 = vmul.f32 %v223, %v223
    %v237 = vsel %vm224, %v236, 0.0
    %238 = vadd.xlane.f32.xlu0 %v237
    %v239 = vpop.xlane.xlu0 %238
    %v240 = vrot.slane %v239, 4
    %v241 = vadd.f32 %v239, %v240
    %v242 = vrot.slane %v241, 2
    %v243 = vadd.f32 %v241, %v242
    %v244 = vrot.slane %v243, 1
    %v245 = vadd.f32 %v243, %v244
    %s246 = vtos %v245
    %v247 = vstv %s246
    %s248 = sld [smem:[#allocation12]]
    %s249 = sld [smem:[#allocation13]]
    %v250 = vmul.f32 %v247, 4.0
    %v251 = vmul.f32 %v235, 2.0
    %v252 = vstv %s248
    %v253 = vmul.f32 %v251, %v252
    %v254 = vsub.f32 %v250, %v253
    %s255 = smul.f32 %s249, 4.0
    %v256 = vstv %s255
    %v257 = vadd.f32 %v254, %v256
    %v258 = vmul.f32 %v257, 0.0625
    %v260 = vperm.slane %v130, 0
    %263 = vrot.lane.b32.xlu0 %v207, 32
    %v264 = vpop.permute.xlu0 %263
    %v265 = vsel %vm143, %v264, 0
    %267 = vmatpush.msra.mxu0 0.0
    %268 = vmatpush.msra.mxu0 0.0
    %269 = vmatpush.msra.mxu0 0.0
    %270 = vmatpush.msra.mxu0 0.0
    %271 = vmatpush.msra.mxu0 0.0
    %272 = vmatpush.msra.mxu0 0.0
    %273 = vmatpush.msra.mxu0 0.0
    %274 = vmatpush.msra.mxu0 0.0
    %275 = vmatpush.msra.mxu0 0.0
    %276 = vmatpush.msra.mxu0 0.0
    %277 = vmatpush.msra.mxu0 0.0
    %278 = vmatpush.msra.mxu0 0.0
    %279 = vmatpush.msra.mxu0 %v128
    %280 = vmatpush.msra.mxu0 %v127
    %281 = vmatpush.msra.mxu0 %v126
    %282 = vmatpush.msra.mxu0 %v125
    %283 = vmatmul.f32.gmra.mxu0 %v265
    %v284 = vpop.f32.mrf.mxu0
    %v285 = vadd.f32 %v260, %v284
    %286 = vdwg.mxu0
    %v287 = vxor.u32 %v285, 2147483648
    %v288 = vmul.f32 %v287, 1.442695
    %v289 = vpow.pop %v288
    %v290 = vadd.f32 %v289, 1.0
    %v291 = vrcp.pop %v290
    %v292 = vmul.f32 %v290, %v291
    %v293 = vsub.f32 1.0, %v292
    %v294 = vmul.f32 %v291, %v293
    %v295 = vadd.f32 %v291, %v294
    %vm296 = vweird.f32 %v290
    %vm297 = vweird.f32 %v291
    %vm298 = vmor %vm296, %vm297
    %v299 = vsel %vm298, %v291, %v295
    %v300 = vand.u32 2147483647, %v290
    %vm301 = vcmp.eq.f32.partialorder %v300, 8.507059e+37
    %v302 = vand.u32 %v290, 2147483648
    %v303 = vor.u32 1.1754944e-38, %v302
    %v304 = vsel %vm301, %v303, %v299
    %v305 = vmul.f32 1.0, %v304
    %v306 = vtanh.pop %v285
    %v307 = vmul.f32 %v305, %v201
    %309 = vrot.lane.b32.xlu0 %v306, 64
    %v310 = vpop.permute.xlu0 %309
    %v312 = vmul.f32 %v305, %v310
    %314 = vrot.lane.b32.xlu0 %v312, 32
    %v315 = vpop.permute.xlu0 %314
    %v317 = vadd.f32 %v307, %v315
    %v318 = vtanh.pop %v317
    %320 = vrot.lane.b32.xlu0 %v318, 64
    %v321 = vpop.permute.xlu0 %320
    %v323 = vmul.f32 %v305, %v321
    %v324 = vmul.f32 %v323, %v211
    %326 = vrot.lane.b32.xlu0 %v324, 32
    %v327 = vpop.permute.xlu0 %326
    %v329 = vsel %vm143, %v327, 0.0
    %330 = vadd.xlane.f32.xlu0 %v329
    %v331 = vpop.xlane.xlu0 %330
    %v332 = vadd.f32 %v331, %v221
    %v333 = vmul.f32 %v332, %v137
    %v334 = vsel %vm224, %v333, 0.0
    %335 = vadd.xlane.f32.xlu0 %v334
    %v336 = vpop.xlane.xlu0 %335
    %v337 = vrot.slane %v336, 4
    %v338 = vadd.f32 %v336, %v337
    %v339 = vrot.slane %v338, 2
    %v340 = vadd.f32 %v338, %v339
    %v341 = vrot.slane %v340, 1
    %v342 = vadd.f32 %v340, %v341
    %s343 = vtos %v342
    %v344 = vstv %s343
    %v345 = vmul.f32 %v333, %v333
    %v346 = vsel %vm224, %v345, 0.0
    %347 = vadd.xlane.f32.xlu0 %v346
    %v348 = vpop.xlane.xlu0 %347
    %v349 = vrot.slane %v348, 4
    %v350 = vadd.f32 %v348, %v349
    %v351 = vrot.slane %v350, 2
    %v352 = vadd.f32 %v350, %v351
    %v353 = vrot.slane %v352, 1
    %v354 = vadd.f32 %v352, %v353
    %s355 = vtos %v354
    %v356 = vstv %s355
    %s357 = sld [smem:[#allocation12 + $0x1]]
    %s358 = sld [smem:[#allocation13 + $0x1]]
    %v359 = vmul.f32 %v356, 4.0
    %v360 = vmul.f32 %v344, 2.0
    %v361 = vstv %s357
    %v362 = vmul.f32 %v360, %v361
    %v363 = vsub.f32 %v359, %v362
    %s364 = smul.f32 %s358, 4.0
    %v365 = vstv %s364
    %v366 = vadd.f32 %v363, %v365
    %v367 = vmul.f32 %v366, 0.0625
    %v368 = vadd.f32 %v258, %v367
    %370 = vrot.lane.b32.xlu0 %v323, 32
    %v371 = vpop.permute.xlu0 %370
    %v372 = vsel %vm143, %v371, 0
    %374 = vmatpush.msra.mxu0 0.0
    %375 = vmatpush.msra.mxu0 0.0
    %376 = vmatpush.msra.mxu0 0.0
    %377 = vmatpush.msra.mxu0 0.0
    %378 = vmatpush.msra.mxu0 0.0
    %379 = vmatpush.msra.mxu0 0.0
    %380 = vmatpush.msra.mxu0 0.0
    %381 = vmatpush.msra.mxu0 0.0
    %382 = vmatpush.msra.mxu0 0.0
    %383 = vmatpush.msra.mxu0 0.0
    %384 = vmatpush.msra.mxu0 0.0
    %385 = vmatpush.msra.mxu0 0.0
    %386 = vmatpush.msra.mxu0 %v128
    %387 = vmatpush.msra.mxu0 %v127
    %388 = vmatpush.msra.mxu0 %v126
    %389 = vmatpush.msra.mxu0 %v125
    %390 = vmatmul.f32.gmra.mxu0 %v372
    %v391 = vpop.f32.mrf.mxu0
    %v392 = vadd.f32 %v260, %v391
    %393 = vdwg.mxu0
    %v394 = vxor.u32 %v392, 2147483648
    %v395 = vmul.f32 %v394, 1.442695
    %v396 = vpow.pop %v395
    %v397 = vadd.f32 %v396, 1.0
    %v398 = vrcp.pop %v397
    %v399 = vmul.f32 %v397, %v398
    %v400 = vsub.f32 1.0, %v399
    %v401 = vmul.f32 %v398, %v400
    %v402 = vadd.f32 %v398, %v401
    %vm403 = vweird.f32 %v397
    %vm404 = vweird.f32 %v398
    %vm405 = vmor %vm403, %vm404
    %v406 = vsel %vm405, %v398, %v402
    %v407 = vand.u32 2147483647, %v397
    %vm408 = vcmp.eq.f32.partialorder %v407, 8.507059e+37
    %v409 = vand.u32 %v397, 2147483648
    %v410 = vor.u32 1.1754944e-38, %v409
    %v411 = vsel %vm408, %v410, %v406
    %v412 = vmul.f32 1.0, %v411
    %v413 = vtanh.pop %v392
    %v414 = vmul.f32 %v412, %v317
    %416 = vrot.lane.b32.xlu0 %v413, 64
    %v417 = vpop.permute.xlu0 %416
    %v419 = vmul.f32 %v412, %v417
    %421 = vrot.lane.b32.xlu0 %v419, 32
    %v422 = vpop.permute.xlu0 %421
    %v424 = vadd.f32 %v414, %v422
    %v425 = vtanh.pop %v424
    %427 = vrot.lane.b32.xlu0 %v425, 64
    %v428 = vpop.permute.xlu0 %427
    %v430 = vmul.f32 %v412, %v428
    %v431 = vmul.f32 %v430, %v211
    %433 = vrot.lane.b32.xlu0 %v431, 32
    %v434 = vpop.permute.xlu0 %433
    %v436 = vsel %vm143, %v434, 0.0
    %437 = vadd.xlane.f32.xlu0 %v436
    %v438 = vpop.xlane.xlu0 %437
    %v439 = vadd.f32 %v438, %v221
    %v440 = vmul.f32 %v439, %v137
    %v441 = vsel %vm224, %v440, 0.0
    %442 = vadd.xlane.f32.xlu0 %v441
    %v443 = vpop.xlane.xlu0 %442
    %v444 = vrot.slane %v443, 4
    %v445 = vadd.f32 %v443, %v444
    %v446 = vrot.slane %v445, 2
    %v447 = vadd.f32 %v445, %v446
    %v448 = vrot.slane %v447, 1
    %v449 = vadd.f32 %v447, %v448
    %s450 = vtos %v449
    %v451 = vstv %s450
    %v452 = vmul.f32 %v440, %v440
    %v453 = vsel %vm224, %v452, 0.0
    %454 = vadd.xlane.f32.xlu0 %v453
    %v455 = vpop.xlane.xlu0 %454
    %v456 = vrot.slane %v455, 4
    %v457 = vadd.f32 %v455, %v456
    %v458 = vrot.slane %v457, 2
    %v459 = vadd.f32 %v457, %v458
    %v460 = vrot.slane %v459, 1
    %v461 = vadd.f32 %v459, %v460
    %s462 = vtos %v461
    %v463 = vstv %s462
    %s464 = sld [smem:[#allocation12 + $0x2]]
    %s465 = sld [smem:[#allocation13 + $0x2]]
    %v466 = vmul.f32 %v463, 4.0
    %v467 = vmul.f32 %v451, 2.0
    %v468 = vstv %s464
    %v469 = vmul.f32 %v467, %v468
    %v470 = vsub.f32 %v466, %v469
    %s471 = smul.f32 %s465, 4.0
    %v472 = vstv %s471
    %v473 = vadd.f32 %v470, %v472
    %v474 = vmul.f32 %v473, 0.0625
    %v475 = vadd.f32 %v368, %v474
    %477 = vrot.lane.b32.xlu0 %v430, 32
    %v478 = vpop.permute.xlu0 %477
    %v479 = vsel %vm143, %v478, 0
    %481 = vmatpush.msra.mxu0 0.0
    %482 = vmatpush.msra.mxu0 0.0
    %483 = vmatpush.msra.mxu0 0.0
    %484 = vmatpush.msra.mxu0 0.0
    %485 = vmatpush.msra.mxu0 0.0
    %486 = vmatpush.msra.mxu0 0.0
    %487 = vmatpush.msra.mxu0 0.0
    %488 = vmatpush.msra.mxu0 0.0
    %489 = vmatpush.msra.mxu0 0.0
    %490 = vmatpush.msra.mxu0 0.0
    %491 = vmatpush.msra.mxu0 0.0
    %492 = vmatpush.msra.mxu0 0.0
    %493 = vmatpush.msra.mxu0 %v128
    %494 = vmatpush.msra.mxu0 %v127
    %495 = vmatpush.msra.mxu0 %v126
    %496 = vmatpush.msra.mxu0 %v125
    %497 = vmatmul.f32.gmra.mxu0 %v479
    %v498 = vpop.f32.mrf.mxu0
    %v499 = vadd.f32 %v260, %v498
    %500 = vdwg.mxu0
    %v501 = vxor.u32 %v499, 2147483648
    %v502 = vmul.f32 %v501, 1.442695
    %v503 = vpow.pop %v502
    %v504 = vadd.f32 %v503, 1.0
    %v505 = vrcp.pop %v504
    %v506 = vmul.f32 %v504, %v505
    %v507 = vsub.f32 1.0, %v506
    %v508 = vmul.f32 %v505, %v507
    %v509 = vadd.f32 %v505, %v508
    %vm510 = vweird.f32 %v504
    %vm511 = vweird.f32 %v505
    %vm512 = vmor %vm510, %vm511
    %v513 = vsel %vm512, %v505, %v509
    %v514 = vand.u32 2147483647, %v504
    %vm515 = vcmp.eq.f32.partialorder %v514, 8.507059e+37
    %v516 = vand.u32 %v504, 2147483648
    %v517 = vor.u32 1.1754944e-38, %v516
    %v518 = vsel %vm515, %v517, %v513
    %v519 = vmul.f32 1.0, %v518
    %v520 = vtanh.pop %v499
    %v521 = vmul.f32 %v519, %v424
    %523 = vrot.lane.b32.xlu0 %v520, 64
    %v524 = vpop.permute.xlu0 %523
    %v526 = vmul.f32 %v519, %v524
    %528 = vrot.lane.b32.xlu0 %v526, 32
    %v529 = vpop.permute.xlu0 %528
    %v531 = vadd.f32 %v521, %v529
    %v532 = vtanh.pop %v531
    %534 = vrot.lane.b32.xlu0 %v532, 64
    %v535 = vpop.permute.xlu0 %534
    %v537 = vmul.f32 %v519, %v535
    %v538 = vmul.f32 %v537, %v211
    %540 = vrot.lane.b32.xlu0 %v538, 32
    %v541 = vpop.permute.xlu0 %540
    %v543 = vsel %vm143, %v541, 0.0
    %544 = vadd.xlane.f32.xlu0 %v543
    %v545 = vpop.xlane.xlu0 %544
    %v546 = vadd.f32 %v545, %v221
    %v547 = vmul.f32 %v546, %v137
    %v548 = vsel %vm224, %v547, 0.0
    %549 = vadd.xlane.f32.xlu0 %v548
    %v550 = vpop.xlane.xlu0 %549
    %v551 = vrot.slane %v550, 4
    %v552 = vadd.f32 %v550, %v551
    %v553 = vrot.slane %v552, 2
    %v554 = vadd.f32 %v552, %v553
    %v555 = vrot.slane %v554, 1
    %v556 = vadd.f32 %v554, %v555
    %s557 = vtos %v556
    %v558 = vstv %s557
    %v559 = vmul.f32 %v547, %v547
    %v560 = vsel %vm224, %v559, 0.0
    %561 = vadd.xlane.f32.xlu0 %v560
    %v562 = vpop.xlane.xlu0 %561
    %v563 = vrot.slane %v562, 4
    %v564 = vadd.f32 %v562, %v563
    %v565 = vrot.slane %v564, 2
    %v566 = vadd.f32 %v564, %v565
    %v567 = vrot.slane %v566, 1
    %v568 = vadd.f32 %v566, %v567
    %s569 = vtos %v568
    %v570 = vstv %s569
    %s571 = sld [smem:[#allocation12 + $0x3]]
    %s572 = sld [smem:[#allocation13 + $0x3]]
    %v573 = vmul.f32 %v570, 4.0
    %v574 = vmul.f32 %v558, 2.0
    %v575 = vstv %s571
    %v576 = vmul.f32 %v574, %v575
    %v577 = vsub.f32 %v573, %v576
    %s578 = smul.f32 %s572, 4.0
    %v579 = vstv %s578
    %v580 = vadd.f32 %v577, %v579
    %v581 = vmul.f32 %v580, 0.0625
    %v582 = vadd.f32 %v475, %v581
    %584 = vrot.lane.b32.xlu0 %v537, 32
    %v585 = vpop.permute.xlu0 %584
    %v586 = vsel %vm143, %v585, 0
    %588 = vmatpush.msra.mxu0 0.0
    %589 = vmatpush.msra.mxu0 0.0
    %590 = vmatpush.msra.mxu0 0.0
    %591 = vmatpush.msra.mxu0 0.0
    %592 = vmatpush.msra.mxu0 0.0
    %593 = vmatpush.msra.mxu0 0.0
    %594 = vmatpush.msra.mxu0 0.0
    %595 = vmatpush.msra.mxu0 0.0
    %596 = vmatpush.msra.mxu0 0.0
    %597 = vmatpush.msra.mxu0 0.0
    %598 = vmatpush.msra.mxu0 0.0
    %599 = vmatpush.msra.mxu0 0.0
    %600 = vmatpush.msra.mxu0 %v128
    %601 = vmatpush.msra.mxu0 %v127
    %602 = vmatpush.msra.mxu0 %v126
    %603 = vmatpush.msra.mxu0 %v125
    %604 = vmatmul.f32.gmra.mxu0 %v586
    %v605 = vpop.f32.mrf.mxu0
    %v606 = vadd.f32 %v260, %v605
    %607 = vdwg.mxu0
    %v608 = vxor.u32 %v606, 2147483648
    %v609 = vmul.f32 %v608, 1.442695
    %v610 = vpow.pop %v609
    %v611 = vadd.f32 %v610, 1.0
    %v612 = vrcp.pop %v611
    %v613 = vmul.f32 %v611, %v612
    %v614 = vsub.f32 1.0, %v613
    %v615 = vmul.f32 %v612, %v614
    %v616 = vadd.f32 %v612, %v615
    %vm617 = vweird.f32 %v611
    %vm618 = vweird.f32 %v612
    %vm619 = vmor %vm617, %vm618
    %v620 = vsel %vm619, %v612, %v616
    %v621 = vand.u32 2147483647, %v611
    %vm622 = vcmp.eq.f32.partialorder %v621, 8.507059e+37
    %v623 = vand.u32 %v611, 2147483648
    %v624 = vor.u32 1.1754944e-38, %v623
    %v625 = vsel %vm622, %v624, %v620
    %v626 = vmul.f32 1.0, %v625
    %v627 = vtanh.pop %v606
    %v628 = vmul.f32 %v626, %v531
    %630 = vrot.lane.b32.xlu0 %v627, 64
    %v631 = vpop.permute.xlu0 %630
    %v633 = vmul.f32 %v626, %v631
    %635 = vrot.lane.b32.xlu0 %v633, 32
    %v636 = vpop.permute.xlu0 %635
    %v638 = vadd.f32 %v628, %v636
    %v639 = vtanh.pop %v638
    %641 = vrot.lane.b32.xlu0 %v639, 64
    %v642 = vpop.permute.xlu0 %641
    %v644 = vmul.f32 %v626, %v642
    %v645 = vmul.f32 %v644, %v211
    %647 = vrot.lane.b32.xlu0 %v645, 32
    %v648 = vpop.permute.xlu0 %647
    %v650 = vsel %vm143, %v648, 0.0
    %651 = vadd.xlane.f32.xlu0 %v650
    %v652 = vpop.xlane.xlu0 %651
    %v653 = vadd.f32 %v652, %v221
    %v654 = vmul.f32 %v653, %v137
    %v655 = vsel %vm224, %v654, 0.0
    %656 = vadd.xlane.f32.xlu0 %v655
    %v657 = vpop.xlane.xlu0 %656
    %v658 = vrot.slane %v657, 4
    %v659 = vadd.f32 %v657, %v658
    %v660 = vrot.slane %v659, 2
    %v661 = vadd.f32 %v659, %v660
    %v662 = vrot.slane %v661, 1
    %v663 = vadd.f32 %v661, %v662
    %s664 = vtos %v663
    %v665 = vstv %s664
    %v666 = vmul.f32 %v654, %v654
    %v667 = vsel %vm224, %v666, 0.0
    %668 = vadd.xlane.f32.xlu0 %v667
    %v669 = vpop.xlane.xlu0 %668
    %v670 = vrot.slane %v669, 4
    %v671 = vadd.f32 %v669, %v670
    %v672 = vrot.slane %v671, 2
    %v673 = vadd.f32 %v671, %v672
    %v674 = vrot.slane %v673, 1
    %v675 = vadd.f32 %v673, %v674
    %s676 = vtos %v675
    %v677 = vstv %s676
    %s678 = sld [smem:[#allocation12 + $0x4]]
    %s679 = sld [smem:[#allocation13 + $0x4]]
    %v680 = vmul.f32 %v677, 4.0
    %v681 = vmul.f32 %v665, 2.0
    %v682 = vstv %s678
    %v683 = vmul.f32 %v681, %v682
    %v684 = vsub.f32 %v680, %v683
    %s685 = smul.f32 %s679, 4.0
    %v686 = vstv %s685
    %v687 = vadd.f32 %v684, %v686
    %v688 = vmul.f32 %v687, 0.0625
    %v689 = vadd.f32 %v582, %v688
    %691 = vrot.lane.b32.xlu0 %v644, 32
    %v692 = vpop.permute.xlu0 %691
    %v693 = vsel %vm143, %v692, 0
    %695 = vmatpush.msra.mxu0 0.0
    %696 = vmatpush.msra.mxu0 0.0
    %697 = vmatpush.msra.mxu0 0.0
    %698 = vmatpush.msra.mxu0 0.0
    %699 = vmatpush.msra.mxu0 0.0
    %700 = vmatpush.msra.mxu0 0.0
    %701 = vmatpush.msra.mxu0 0.0
    %702 = vmatpush.msra.mxu0 0.0
    %703 = vmatpush.msra.mxu0 0.0
    %704 = vmatpush.msra.mxu0 0.0
    %705 = vmatpush.msra.mxu0 0.0
    %706 = vmatpush.msra.mxu0 0.0
    %707 = vmatpush.msra.mxu0 %v128
    %708 = vmatpush.msra.mxu0 %v127
    %709 = vmatpush.msra.mxu0 %v126
    %710 = vmatpush.msra.mxu0 %v125
    %711 = vmatmul.f32.gmra.mxu0 %v693
    %v712 = vpop.f32.mrf.mxu0
    %v713 = vadd.f32 %v260, %v712
    %714 = vdwg.mxu0
    %v715 = vxor.u32 %v713, 2147483648
    %v716 = vmul.f32 %v715, 1.442695
    %v717 = vpow.pop %v716
    %v718 = vadd.f32 %v717, 1.0
    %v719 = vrcp.pop %v718
    %v720 = vmul.f32 %v718, %v719
    %v721 = vsub.f32 1.0, %v720
    %v722 = vmul.f32 %v719, %v721
    %v723 = vadd.f32 %v719, %v722
    %vm724 = vweird.f32 %v718
    %vm725 = vweird.f32 %v719
    %vm726 = vmor %vm724, %vm725
    %v727 = vsel %vm726, %v719, %v723
    %v728 = vand.u32 2147483647, %v718
    %vm729 = vcmp.eq.f32.partialorder %v728, 8.507059e+37
    %v730 = vand.u32 %v718, 2147483648
    %v731 = vor.u32 1.1754944e-38, %v730
    %v732 = vsel %vm729, %v731, %v727
    %v733 = vmul.f32 1.0, %v732
    %v734 = vtanh.pop %v713
    %v735 = vmul.f32 %v733, %v638
    %737 = vrot.lane.b32.xlu0 %v734, 64
    %v738 = vpop.permute.xlu0 %737
    %v740 = vmul.f32 %v733, %v738
    %742 = vrot.lane.b32.xlu0 %v740, 32
    %v743 = vpop.permute.xlu0 %742
    %v745 = vadd.f32 %v735, %v743
    %v746 = vtanh.pop %v745
    %748 = vrot.lane.b32.xlu0 %v746, 64
    %v749 = vpop.permute.xlu0 %748
    %v751 = vmul.f32 %v733, %v749
    %v752 = vmul.f32 %v751, %v211
    %754 = vrot.lane.b32.xlu0 %v752, 32
    %v755 = vpop.permute.xlu0 %754
    %v757 = vsel %vm143, %v755, 0.0
    %758 = vadd.xlane.f32.xlu0 %v757
    %v759 = vpop.xlane.xlu0 %758
    %v760 = vadd.f32 %v759, %v221
    %v761 = vmul.f32 %v760, %v137
    %v762 = vsel %vm224, %v761, 0.0
    %763 = vadd.xlane.f32.xlu0 %v762
    %v764 = vpop.xlane.xlu0 %763
    %v765 = vrot.slane %v764, 4
    %v766 = vadd.f32 %v764, %v765
    %v767 = vrot.slane %v766, 2
    %v768 = vadd.f32 %v766, %v767
    %v769 = vrot.slane %v768, 1
    %v770 = vadd.f32 %v768, %v769
    %s771 = vtos %v770
    %v772 = vstv %s771
    %v773 = vmul.f32 %v761, %v761
    %v774 = vsel %vm224, %v773, 0.0
    %775 = vadd.xlane.f32.xlu0 %v774
    %v776 = vpop.xlane.xlu0 %775
    %v777 = vrot.slane %v776, 4
    %v778 = vadd.f32 %v776, %v777
    %v779 = vrot.slane %v778, 2
    %v780 = vadd.f32 %v778, %v779
    %v781 = vrot.slane %v780, 1
    %v782 = vadd.f32 %v780, %v781
    %s783 = vtos %v782
    %v784 = vstv %s783
    %s785 = sld [smem:[#allocation12 + $0x5]]
    %s786 = sld [smem:[#allocation13 + $0x5]]
    %v787 = vmul.f32 %v784, 4.0
    %v788 = vmul.f32 %v772, 2.0
    %v789 = vstv %s785
    %v790 = vmul.f32 %v788, %v789
    %v791 = vsub.f32 %v787, %v790
    %s792 = smul.f32 %s786, 4.0
    %v793 = vstv %s792
    %v794 = vadd.f32 %v791, %v793
    %v795 = vmul.f32 %v794, 0.0625
    %v796 = vadd.f32 %v689, %v795
    %798 = vrot.lane.b32.xlu0 %v751, 32
    %v799 = vpop.permute.xlu0 %798
    %v800 = vsel %vm143, %v799, 0
    %802 = vmatpush.msra.mxu0 0.0
    %803 = vmatpush.msra.mxu0 0.0
    %804 = vmatpush.msra.mxu0 0.0
    %805 = vmatpush.msra.mxu0 0.0
    %806 = vmatpush.msra.mxu0 0.0
    %807 = vmatpush.msra.mxu0 0.0
    %808 = vmatpush.msra.mxu0 0.0
    %809 = vmatpush.msra.mxu0 0.0
    %810 = vmatpush.msra.mxu0 0.0
    %811 = vmatpush.msra.mxu0 0.0
    %812 = vmatpush.msra.mxu0 0.0
    %813 = vmatpush.msra.mxu0 0.0
    %814 = vmatpush.msra.mxu0 %v128
    %815 = vmatpush.msra.mxu0 %v127
    %816 = vmatpush.msra.mxu0 %v126
    %817 = vmatpush.msra.mxu0 %v125
    %818 = vmatmul.f32.gmra.mxu0 %v800
    %v819 = vpop.f32.mrf.mxu0
    %v820 = vadd.f32 %v260, %v819
    %821 = vdwg.mxu0
    %v822 = vxor.u32 %v820, 2147483648
    %v823 = vmul.f32 %v822, 1.442695
    %v824 = vpow.pop %v823
    %v825 = vadd.f32 %v824, 1.0
    %v826 = vrcp.pop %v825
    %v827 = vmul.f32 %v825, %v826
    %v828 = vsub.f32 1.0, %v827
    %v829 = vmul.f32 %v826, %v828
    %v830 = vadd.f32 %v826, %v829
    %vm831 = vweird.f32 %v825
    %vm832 = vweird.f32 %v826
    %vm833 = vmor %vm831, %vm832
    %v834 = vsel %vm833, %v826, %v830
    %v835 = vand.u32 2147483647, %v825
    %vm836 = vcmp.eq.f32.partialorder %v835, 8.507059e+37
    %v837 = vand.u32 %v825, 2147483648
    %v838 = vor.u32 1.1754944e-38, %v837
    %v839 = vsel %vm836, %v838, %v834
    %v840 = vmul.f32 1.0, %v839
    %v841 = vtanh.pop %v820
    %v842 = vmul.f32 %v840, %v745
    %844 = vrot.lane.b32.xlu0 %v841, 64
    %v845 = vpop.permute.xlu0 %844
    %v847 = vmul.f32 %v840, %v845
    %849 = vrot.lane.b32.xlu0 %v847, 32
    %v850 = vpop.permute.xlu0 %849
    %v852 = vadd.f32 %v842, %v850
    %v853 = vtanh.pop %v852
    %855 = vrot.lane.b32.xlu0 %v853, 64
    %v856 = vpop.permute.xlu0 %855
    %v858 = vmul.f32 %v840, %v856
    %v859 = vmul.f32 %v858, %v211
    %861 = vrot.lane.b32.xlu0 %v859, 32
    %v862 = vpop.permute.xlu0 %861
    %v864 = vsel %vm143, %v862, 0.0
    %865 = vadd.xlane.f32.xlu0 %v864
    %v866 = vpop.xlane.xlu0 %865
    %v867 = vadd.f32 %v866, %v221
    %v868 = vmul.f32 %v867, %v137
    %v869 = vsel %vm224, %v868, 0.0
    %870 = vadd.xlane.f32.xlu0 %v869
    %v871 = vpop.xlane.xlu0 %870
    %v872 = vrot.slane %v871, 4
    %v873 = vadd.f32 %v871, %v872
    %v874 = vrot.slane %v873, 2
    %v875 = vadd.f32 %v873, %v874
    %v876 = vrot.slane %v875, 1
    %v877 = vadd.f32 %v875, %v876
    %s878 = vtos %v877
    %v879 = vstv %s878
    %v880 = vmul.f32 %v868, %v868
    %v881 = vsel %vm224, %v880, 0.0
    %882 = vadd.xlane.f32.xlu0 %v881
    %v883 = vpop.xlane.xlu0 %882
    %v884 = vrot.slane %v883, 4
    %v885 = vadd.f32 %v883, %v884
    %v886 = vrot.slane %v885, 2
    %v887 = vadd.f32 %v885, %v886
    %v888 = vrot.slane %v887, 1
    %v889 = vadd.f32 %v887, %v888
    %s890 = vtos %v889
    %v891 = vstv %s890
    %s892 = sld [smem:[#allocation12 + $0x6]]
    %s893 = sld [smem:[#allocation13 + $0x6]]
    %v894 = vmul.f32 %v891, 4.0
    %v895 = vmul.f32 %v879, 2.0
    %v896 = vstv %s892
    %v897 = vmul.f32 %v895, %v896
    %v898 = vsub.f32 %v894, %v897
    %s899 = smul.f32 %s893, 4.0
    %v900 = vstv %s899
    %v901 = vadd.f32 %v898, %v900
    %v902 = vmul.f32 %v901, 0.0625
    %v903 = vadd.f32 %v796, %v902
    %905 = vrot.lane.b32.xlu0 %v858, 32
    %v906 = vpop.permute.xlu0 %905
    %v907 = vsel %vm143, %v906, 0
    %909 = vmatpush.msra.mxu0 0.0
    %910 = vmatpush.msra.mxu0 0.0
    %911 = vmatpush.msra.mxu0 0.0
    %912 = vmatpush.msra.mxu0 0.0
    %913 = vmatpush.msra.mxu0 0.0
    %914 = vmatpush.msra.mxu0 0.0
    %915 = vmatpush.msra.mxu0 0.0
    %916 = vmatpush.msra.mxu0 0.0
    %917 = vmatpush.msra.mxu0 0.0
    %918 = vmatpush.msra.mxu0 0.0
    %919 = vmatpush.msra.mxu0 0.0
    %920 = vmatpush.msra.mxu0 0.0
    %921 = vmatpush.msra.mxu0 %v128
    %922 = vmatpush.msra.mxu0 %v127
    %923 = vmatpush.msra.mxu0 %v126
    %924 = vmatpush.msra.mxu0 %v125
    %925 = vmatmul.f32.gmra.mxu0 %v907
    %v926 = vpop.f32.mrf.mxu0
    %v927 = vadd.f32 %v260, %v926
    %928 = vdwg.mxu0
    %v929 = vxor.u32 %v927, 2147483648
    %v930 = vmul.f32 %v929, 1.442695
    %v931 = vpow.pop %v930
    %v932 = vadd.f32 %v931, 1.0
    %v933 = vrcp.pop %v932
    %v934 = vmul.f32 %v932, %v933
    %v935 = vsub.f32 1.0, %v934
    %v936 = vmul.f32 %v933, %v935
    %v937 = vadd.f32 %v933, %v936
    %vm938 = vweird.f32 %v932
    %vm939 = vweird.f32 %v933
    %vm940 = vmor %vm938, %vm939
    %v941 = vsel %vm940, %v933, %v937
    %v942 = vand.u32 2147483647, %v932
    %vm943 = vcmp.eq.f32.partialorder %v942, 8.507059e+37
    %v944 = vand.u32 %v932, 2147483648
    %v945 = vor.u32 1.1754944e-38, %v944
    %v946 = vsel %vm943, %v945, %v941
    %v947 = vmul.f32 1.0, %v946
    %v948 = vtanh.pop %v927
    %v949 = vmul.f32 %v947, %v852
    %951 = vrot.lane.b32.xlu0 %v948, 64
    %v952 = vpop.permute.xlu0 %951
    %v954 = vmul.f32 %v947, %v952
    %956 = vrot.lane.b32.xlu0 %v954, 32
    %v957 = vpop.permute.xlu0 %956
    %v959 = vadd.f32 %v949, %v957
    %v960 = vtanh.pop %v959
    %962 = vrot.lane.b32.xlu0 %v960, 64
    %v963 = vpop.permute.xlu0 %962
    %v965 = vmul.f32 %v947, %v963
    %v966 = vmul.f32 %v965, %v211
    %968 = vrot.lane.b32.xlu0 %v966, 32
    %v969 = vpop.permute.xlu0 %968
    %v971 = vsel %vm143, %v969, 0.0
    %972 = vadd.xlane.f32.xlu0 %v971
    %v973 = vpop.xlane.xlu0 %972
    %v974 = vadd.f32 %v973, %v221
    %v975 = vmul.f32 %v974, %v137
    %v976 = vsel %vm224, %v975, 0.0
    %977 = vadd.xlane.f32.xlu0 %v976
    %v978 = vpop.xlane.xlu0 %977
    %v979 = vrot.slane %v978, 4
    %v980 = vadd.f32 %v978, %v979
    %v981 = vrot.slane %v980, 2
    %v982 = vadd.f32 %v980, %v981
    %v983 = vrot.slane %v982, 1
    %v984 = vadd.f32 %v982, %v983
    %s985 = vtos %v984
    %v986 = vstv %s985
    %v987 = vmul.f32 %v975, %v975
    %v988 = vsel %vm224, %v987, 0.0
    %989 = vadd.xlane.f32.xlu0 %v988
    %v990 = vpop.xlane.xlu0 %989
    %v991 = vrot.slane %v990, 4
    %v992 = vadd.f32 %v990, %v991
    %v993 = vrot.slane %v992, 2
    %v994 = vadd.f32 %v992, %v993
    %v995 = vrot.slane %v994, 1
    %v996 = vadd.f32 %v994, %v995
    %s997 = vtos %v996
    %v998 = vstv %s997
    %s999 = sld [smem:[#allocation12 + $0x7]]
    %s1000 = sld [smem:[#allocation13 + $0x7]]
    %v1001 = vmul.f32 %v998, 4.0
    %v1002 = vmul.f32 %v986, 2.0
    %v1003 = vstv %s999
    %v1004 = vmul.f32 %v1002, %v1003
    %v1005 = vsub.f32 %v1001, %v1004
    %s1006 = smul.f32 %s1000, 4.0
    %v1007 = vstv %s1006
    %v1008 = vadd.f32 %v1005, %v1007
    %v1009 = vmul.f32 %v1008, 0.0625
    %v1010 = vadd.f32 %v903, %v1009
    %vm1011 = vcmask 0
    %1012 = vst.msk [vmem:[#allocation15] sm:$0x1] %vm1011, %v1010
    // Predicated region
    $region66: #{tpu_custom_call.1} parent=1 // pred_check
      _
    $region67: #{tpu_custom_call.1} parent=1 // pred_check_branch
      %1014 = sbr.rel (0) target = $region69
    $region68: #{tpu_custom_call.1} parent=1 // pred_region
      %1016 = vsyncadd [#allocation5], 0
      %s1018 = sshll.u32 [#allocation15], 4
      %s1019 = int_to_ptr.vmem [resolvable:$true] %s1018
      %s1020 = sshll.u32 %s10, 4
      %s1021 = int_to_ptr.hbm [resolvable:$true] %s1020
      %1023 = dma.vmem_to_hbm [thread:$0]  %s1019, 16, %s1021, [#allocation5]
    $region69: #{tpu_custom_call.1} parent=1 // pred_fallthru
      _
    // Predicated region
    $region70: #{tpu_custom_call.1} parent=1 // pred_check
      _
    $region71: #{tpu_custom_call.1} parent=1 // pred_check_branch
      %1025 = sbr.rel (0) target = $region73
    $region72: #{tpu_custom_call.1} parent=1 // pred_region
      %1027 = dma.done [#allocation5], 16
    $region73: #{tpu_custom_call.1} parent=1 // pred_fallthru
      _
    %1028 = vsyncpa [#allocation4], 1
    %1029 = vsyncpa [#allocation8], 1
    %1030 = vsyncpa [#allocation11], 1
    %1031 = vsyncpa [#allocation5], 1
    %1032 = vsyncpa [#allocation6], 1
    %1033 = vsyncpa [#allocation14], 1

</llo_original>
